<compile_context>
chip_gen: v5e
topology: v5e:2x2
jax: 0.10.0
libtpu: 0.0.40
codegen_flags: <defaults>
</compile_context>

<pallas_src>
import functools

import jax
import jax.numpy as jnp
from jax import lax
from jax.experimental import pallas as pl
from jax.experimental.pallas import tpu as pltpu

BN_EPS = 1e-5


# ----------------------------- helpers ---------------------------------------
def round_up(x, m):
    return (x + m - 1) // m * m


def pick_tk(k_pad):
    for cand in (512, 256, 128):
        if k_pad % cand == 0:
            return cand
    return k_pad  # unreachable: k_pad is always a multiple of 128


# ----------------------------- Pallas kernels --------------------------------
def conv_bn_kernel(*refs, apply_relu, has_residual):
    """Tiled GEMM (im2col patches @ weights) with f32 accumulator; on the last K
    step the epilogue fuses BatchNorm(batch stats over full M) [+residual][+ReLU]."""
    if has_residual:
        a_ref, w_ref, g_ref, b_ref, res_ref, out_ref, acc_ref = refs
    else:
        a_ref, w_ref, g_ref, b_ref, out_ref, acc_ref = refs
        res_ref = None

    k = pl.program_id(1)

    @pl.when(k == 0)
    def _init():
        acc_ref[...] = jnp.zeros_like(acc_ref)

    acc_ref[...] += jnp.dot(a_ref[...], w_ref[...],
                            preferred_element_type=jnp.float32)

    @pl.when(k == pl.num_programs(1) - 1)
    def _finalize():
        y = acc_ref[...]                                   # (M, tn) f32
        m = y.shape[0]
        mean = jnp.sum(y, axis=0, keepdims=True) * (1.0 / m)
        diff = y - mean
        var = jnp.sum(diff * diff, axis=0, keepdims=True) * (1.0 / m)  # biased, as in BN fwd
        out = diff * lax.rsqrt(var + BN_EPS) * g_ref[...] + b_ref[...]
        if has_residual:
            out = out + res_ref[...].astype(jnp.float32)
        if apply_relu:
            out = jnp.maximum(out, 0.0)
        out_ref[...] = out.astype(out_ref.dtype)
    # TODO(synk): running_mean/running_var buffer updates of train-mode BN are not
    # modeled (they do not affect the value returned by forward()).


def avgpool_fc_kernel(x_ref, w_ref, b_ref, out_ref):
    # x_ref: (N, H*W, C) bf16 -> AdaptiveAvgPool2d((1,1)) + flatten + fc(512->num_class)
    feat = jnp.mean(x_ref[...].astype(jnp.float32), axis=1)            # (N, C) f32
    out_ref[...] = (jnp.dot(feat.astype(jnp.bfloat16), w_ref[...],
                            preferred_element_type=jnp.float32) + b_ref[...])


# ------------------------------ JAX glue --------------------------------------
def im2col(x, kh, kw, stride, pad):
    """x: (N,H,W,C) NHWC -> patches (N*OH*OW, kh*kw*C), tap order (kh, kw, C)."""
    n, h, w, c = x.shape
    xp = jnp.pad(x, ((0, 0), (pad, pad), (pad, pad), (0, 0)))
    oh = (h + 2 * pad - kh) // stride + 1
    ow = (w + 2 * pad - kw) // stride + 1
    cols = []
    for i in range(kh):
        for j in range(kw):
            cols.append(xp[:, i:i + stride * oh:stride, j:j + stride * ow:stride, :])
    patches = jnp.concatenate(cols, axis=-1)          # (N, OH, OW, kh*kw*C)
    return patches.reshape(n * oh * ow, kh * kw * c), (n, oh, ow)


def conv_bn_act(x, w, gamma, beta, *, stride, relu, residual=None):
    """Conv(no bias) + BN(batch stats) [+residual] [+ReLU] as one tiled Pallas GEMM.

    x:        (N,H,W,C_pad) bf16, channels possibly zero-padded (real channels = w.shape[2])
    returns:  (N,OH,OW,N_pad) bf16, N_pad = round_up(cout, 128)
    """
    kh, kw, cin, cout = w.shape
    pad = (kh - 1) // 2
    x = x[..., :cin]                                   # drop channel padding from previous layer

    a, (n, oh, ow) = im2col(x, kh, kw, stride, pad)    # (M, K) bf16
    M, K = a.shape
    K_pad = round_up(K, 128)
    N_pad = round_up(cout, 128)
    tk = pick_tk(K_pad)
    tn = 256 if N_pad % 256 == 0 else 128

    a = jnp.pad(a, ((0, 0), (0, K_pad - K)))
    wm = jnp.pad(w.reshape(K, cout).astype(jnp.bfloat16),
                 ((0, K_pad - K), (0, N_pad - cout)))
    g = jnp.pad(gamma.reshape(1, cout), ((0, 0), (0, N_pad - cout)))
    b = jnp.pad(beta.reshape(1, cout), ((0, 0), (0, N_pad - cout)))

    args = [a, wm, g, b]
    in_specs = [
        pl.BlockSpec((M, tk), lambda j, k: (0, k)),       # patches
        pl.BlockSpec((tk, tn), lambda j, k: (k, j)),      # weights
        pl.BlockSpec((1, tn), lambda j, k: (0, j)),       # gamma (VMEM-resident across k)
        pl.BlockSpec((1, tn), lambda j, k: (0, j)),       # beta
    ]
    if residual is not None:
        args.append(residual.reshape(M, N_pad))
        in_specs.append(pl.BlockSpec((M, tn), lambda j, k: (0, j)))

    kernel = functools.partial(conv_bn_kernel, apply_relu=relu,
                               has_residual=residual is not None)
    flops = 2 * M * K_pad * N_pad
    bytes_accessed = 2 * (M * K_pad + K_pad * N_pad + M * N_pad
                          + (M * N_pad if residual is not None else 0))

    out = pl.pallas_call(
        kernel,
        grid=(N_pad // tn, K_pad // tk),                  # (out-channel tiles, K reduction)
        in_specs=in_specs,
        out_specs=pl.BlockSpec((M, tn), lambda j, k: (0, j)),
        out_shape=jax.ShapeDtypeStruct((M, N_pad), jnp.bfloat16),
        scratch_shapes=[pltpu.VMEM((M, tn), jnp.float32)],
        compiler_params=pltpu.CompilerParams(
            dimension_semantics=("parallel", "arbitrary"),
            vmem_limit_bytes=48 * 1024 * 1024),
        cost_estimate=pl.CostEstimate(flops=flops, transcendentals=0,
                                      bytes_accessed=bytes_accessed),
    )(*args)
    return out.reshape(n, oh, ow, N_pad)


# --------------------------- parameter construction ---------------------------
def init_backbone_params(key):
    """Modified ResNet-18 trunk of Unsupervised_1.f (3x3 stem, no maxpool, no fc)."""
    keys = iter(jax.random.split(key, 64))

    def conv_w(k, kh, kw, cin, cout):
        std = (2.0 / (kh * kw * cin)) ** 0.5
        return jax.random.normal(k, (kh, kw, cin, cout), jnp.float32) * std

    params = {
        "conv1_w": conv_w(next(keys), 3, 3, 3, 64),
        "bn1_g": jnp.ones((64,), jnp.float32),
        "bn1_b": jnp.zeros((64,), jnp.float32),
        "layers": [],
    }
    stages = [(64, 64, 1), (64, 128, 2), (128, 256, 2), (256, 512, 2)]
    for cin, cout, stride in stages:
        blocks = []
        for bidx in range(2):
            s = stride if bidx == 0 else 1
            bcin = cin if bidx == 0 else cout
            blk = {
                "stride": s,
                "conv1_w": conv_w(next(keys), 3, 3, bcin, cout),
                "bn1_g": jnp.ones((cout,), jnp.float32),
                "bn1_b": jnp.zeros((cout,), jnp.float32),
                "conv2_w": conv_w(next(keys), 3, 3, cout, cout),
                "bn2_g": jnp.ones((cout,), jnp.float32),
                "bn2_b": jnp.zeros((cout,), jnp.float32),
            }
            if s != 1 or bcin != cout:   # downsample branch (1x1 conv, stride s, + BN)
                blk["down_w"] = conv_w(next(keys), 1, 1, bcin, cout)
                blk["dbn_g"] = jnp.ones((cout,), jnp.float32)
                blk["dbn_b"] = jnp.zeros((cout,), jnp.float32)
            blocks.append(blk)
        params["layers"].append(blocks)
    return params


# ------------------------------- forward pass ----------------------------------
def finetune_forward(params, fc_w, fc_b, x_nchw):
    x = jnp.transpose(x_nchw, (0, 2, 3, 1)).astype(jnp.bfloat16)  # NCHW -> NHWC, bf16 activations

    # stem: 3x3 s1 p1 conv + BN + ReLU  (maxpool is dropped in Unsupervised_1)
    x = conv_bn_act(x, params["conv1_w"], params["bn1_g"], params["bn1_b"],
                    stride=1, relu=True)

    # BasicBlock stages (layer1..layer4)
    for blocks in params["layers"]:
        for blk in blocks:
            identity = x
            out = conv_bn_act(x, blk["conv1_w"], blk["bn1_g"], blk["bn1_b"],
                              stride=blk["stride"], relu=True)
            if "down_w" in blk:
                identity = conv_bn_act(x, blk["down_w"], blk["dbn_g"], blk["dbn_b"],
                                       stride=blk["stride"], relu=False)
            x = conv_bn_act(out, blk["conv2_w"], blk["bn2_g"], blk["bn2_b"],
                            stride=1, relu=True, residual=identity)

    # fused adaptive-average-pool(1x1) + flatten + fc(512 -> num_class)
    n, h, w, _ = x.shape
    c = 512                                             # real channels of layer4 output
    x3 = x[..., :c].reshape(n, h * w, c)
    ncls = fc_w.shape[1]
    ncls_pad = round_up(ncls, 128)
    w_p = jnp.pad(fc_w.astype(jnp.bfloat16), ((0, 0), (0, ncls_pad - ncls)))
    b_p = jnp.pad(fc_b.reshape(1, ncls), ((0, 0), (0, ncls_pad - ncls)))

    out = pl.pallas_call(
        avgpool_fc_kernel,
        grid=(1,),
        in_specs=[pl.BlockSpec(x3.shape, lambda i: (0, 0, 0)),
                  pl.BlockSpec(w_p.shape, lambda i: (0, 0)),
                  pl.BlockSpec(b_p.shape, lambda i: (0, 0))],
        out_specs=pl.BlockSpec((n, ncls_pad), lambda i: (0, 0)),
        out_shape=jax.ShapeDtypeStruct((n, ncls_pad), jnp.float32),
        compiler_params=pltpu.CompilerParams(vmem_limit_bytes=48 * 1024 * 1024),
    )(x3, w_p, b_p)
    return out[:, :ncls]


# ---------------------------------- main ----------------------------------------
if __name__ == "__main__":
    key = jax.random.PRNGKey(0)
    k_params, k_fcw, k_fcb, k_x = jax.random.split(key, 4)

    num_class = 10
    params = init_backbone_params(k_params)
    fc_w = jax.random.normal(k_fcw, (512, num_class), jnp.float32) * (1.0 / 512 ** 0.5)
    fc_b = jax.random.normal(k_fcb, (num_class,), jnp.float32) * 0.01

    # small input consistent with the module: NCHW, 3 channels
    x = jax.random.normal(k_x, (2, 3, 16, 16), jnp.float32)

    out = finetune_forward(params, fc_w, fc_b, x)
    out = jax.block_until_ready(out)
    assert out.shape == (2, num_class) and out.dtype == jnp.float32
    print("KERNEL_OK")
</pallas_src>

<mosaic_0001>
module attributes {stable_mosaic.version = 11 : i64} {
  func.func @conv_bn_kernel(%arg0: i32, %arg1: i32, %arg2: memref<512x128xbf16, #tpu.memory_space<vmem>>, %arg3: memref<128x128xbf16, #tpu.memory_space<vmem>>, %arg4: memref<1x128xf32, #tpu.memory_space<vmem>>, %arg5: memref<1x128xf32, #tpu.memory_space<vmem>>, %arg6: memref<512x128xbf16, #tpu.memory_space<vmem>>, %arg7: memref<512x128xf32, #tpu.memory_space<vmem>>) attributes {dimension_semantics = [#tpu.dimension_semantics<parallel>, #tpu.dimension_semantics<arbitrary>], iteration_bounds = array<i64: 1, 1>, scalar_prefetch = 0 : i64, scratch_operands = 1 : i64, tpu.core_type = #tpu.core_type<tc>, window_params = [{transform_indices = @transform_0, window_bounds = array<i64: 512, 128>}, {transform_indices = @transform_1, window_bounds = array<i64: 128, 128>}, {transform_indices = @transform_2, window_bounds = array<i64: 1, 128>}, {transform_indices = @transform_3, window_bounds = array<i64: 1, 128>}, {transform_indices = @transform_4, window_bounds = array<i64: 512, 128>}]} {
    %c0_i32 = arith.constant 0 : i32
    %0 = arith.cmpi eq, %arg1, %c0_i32 : i32
    %1 = arith.extui %0 : i1 to i32
    %c0_i32_0 = arith.constant 0 : i32
    %2 = arith.cmpi ne, %1, %c0_i32_0 : i32
    scf.if %2 {
      %cst_10 = arith.constant 0.000000e+00 : f32
      %12 = vector.broadcast %cst_10 : f32 to vector<512x128xf32>
      %c0_11 = arith.constant 0 : index
      %c0_12 = arith.constant 0 : index
      %13 = vector.load %arg7[%c0_11, %c0_12] : memref<512x128xf32, #tpu.memory_space<vmem>>, vector<512x128xf32>
      tpu.vector_store %arg7[%c0_11, %c0_12], %12 {strides = array<i32>} : memref<512x128xf32, #tpu.memory_space<vmem>>, vector<512x128xf32>,
    } else {
    }
    %c0 = arith.constant 0 : index
    %c0_1 = arith.constant 0 : index
    %3 = vector.load %arg7[%c0, %c0_1] : memref<512x128xf32, #tpu.memory_space<vmem>>, vector<512x128xf32>
    %c0_2 = arith.constant 0 : index
    %c0_3 = arith.constant 0 : index
    %4 = vector.load %arg2[%c0_2, %c0_3] : memref<512x128xbf16, #tpu.memory_space<vmem>>, vector<512x128xbf16>
    %c0_4 = arith.constant 0 : index
    %c0_5 = arith.constant 0 : index
    %5 = vector.load %arg3[%c0_4, %c0_5] : memref<128x128xbf16, #tpu.memory_space<vmem>>, vector<128x128xbf16>
    %cst = arith.constant dense<0.000000e+00> : vector<512x128xf32>
    %6 = tpu.matmul %4, %5, %cst {dimension_numbers = #tpu.dot_dimension_numbers<[1], [0], [0], [1], [0, 0, 1, 1], [], []>} : vector<512x128xbf16>, vector<128x128xbf16>, vector<512x128xf32> -> vector<512x128xf32>
    %7 = arith.addf %3, %6 : vector<512x128xf32>
    %c0_6 = arith.constant 0 : index
    %c0_7 = arith.constant 0 : index
    %8 = vector.load %arg7[%c0_6, %c0_7] : memref<512x128xf32, #tpu.memory_space<vmem>>, vector<512x128xf32>
    tpu.vector_store %arg7[%c0_6, %c0_7], %7 {strides = array<i32>} : memref<512x128xf32, #tpu.memory_space<vmem>>, vector<512x128xf32>,
    %c0_i32_8 = arith.constant 0 : i32
    %9 = arith.cmpi eq, %arg1, %c0_i32_8 : i32
    %10 = arith.extui %9 : i1 to i32
    %c0_i32_9 = arith.constant 0 : i32
    %11 = arith.cmpi ne, %10, %c0_i32_9 : i32
    scf.if %11 {
      %c0_10 = arith.constant 0 : index
      %c0_11 = arith.constant 0 : index
      %12 = vector.load %arg7[%c0_10, %c0_11] : memref<512x128xf32, #tpu.memory_space<vmem>>, vector<512x128xf32>
      %cst_12 = arith.constant dense<0.000000e+00> : vector<128xf32>
      %13 = vector.multi_reduction <add>, %12, %cst_12 [0] : vector<512x128xf32> to vector<128xf32>
      %14 = vector.shape_cast %13 : vector<128xf32> to vector<1x128xf32>
      %cst_13 = arith.constant 0.001953125 : f32
      %15 = vector.broadcast %cst_13 : f32 to vector<1x128xf32>
      %16 = arith.mulf %14, %15 : vector<1x128xf32>
      %17 = vector.broadcast %16 : vector<1x128xf32> to vector<512x128xf32>
      %18 = arith.subf %12, %17 : vector<512x128xf32>
      %19 = arith.mulf %18, %18 : vector<512x128xf32>
      %cst_14 = arith.constant dense<0.000000e+00> : vector<128xf32>
      %20 = vector.multi_reduction <add>, %19, %cst_14 [0] : vector<512x128xf32> to vector<128xf32>
      %21 = vector.shape_cast %20 : vector<128xf32> to vector<1x128xf32>
      %cst_15 = arith.constant 0.001953125 : f32
      %22 = vector.broadcast %cst_15 : f32 to vector<1x128xf32>
      %23 = arith.mulf %21, %22 : vector<1x128xf32>
      %cst_16 = arith.constant 9.99999974E-6 : f32
      %24 = vector.broadcast %cst_16 : f32 to vector<1x128xf32>
      %25 = arith.addf %23, %24 : vector<1x128xf32>
      %26 = math.rsqrt %25 : vector<1x128xf32>
      %27 = vector.broadcast %26 : vector<1x128xf32> to vector<512x128xf32>
      %28 = arith.mulf %18, %27 : vector<512x128xf32>
      %c0_17 = arith.constant 0 : index
      %c0_18 = arith.constant 0 : index
      %29 = vector.load %arg4[%c0_17, %c0_18] : memref<1x128xf32, #tpu.memory_space<vmem>>, vector<1x128xf32>
      %30 = vector.broadcast %29 : vector<1x128xf32> to vector<512x128xf32>
      %31 = arith.mulf %28, %30 : vector<512x128xf32>
      %c0_19 = arith.constant 0 : index
      %c0_20 = arith.constant 0 : index
      %32 = vector.load %arg5[%c0_19, %c0_20] : memref<1x128xf32, #tpu.memory_space<vmem>>, vector<1x128xf32>
      %33 = vector.broadcast %32 : vector<1x128xf32> to vector<512x128xf32>
      %34 = arith.addf %31, %33 : vector<512x128xf32>
      %cst_21 = arith.constant 0.000000e+00 : f32
      %35 = vector.broadcast %cst_21 : f32 to vector<512x128xf32>
      %36 = arith.maximumf %34, %35 : vector<512x128xf32>
      %37 = arith.truncf %36 : vector<512x128xf32> to vector<512x128xbf16>
      %c0_22 = arith.constant 0 : index
      %c0_23 = arith.constant 0 : index
      %38 = vector.load %arg6[%c0_22, %c0_23] : memref<512x128xbf16, #tpu.memory_space<vmem>>, vector<512x128xbf16>
      tpu.vector_store %arg6[%c0_22, %c0_23], %37 {strides = array<i32>} : memref<512x128xbf16, #tpu.memory_space<vmem>>, vector<512x128xbf16>,
    } else {
    }
    return
  }
  func.func @transform_0(%arg0: i32, %arg1: i32) -> (i32, i32) {
    %c0_i32 = arith.constant 0 : i32
    %c0_i32_0 = arith.constant 0 : i32
    return %c0_i32, %arg1 : i32, i32
  }
  func.func @transform_1(%arg0: i32, %arg1: i32) -> (i32, i32) {
    %c0_i32 = arith.constant 0 : i32
    return %arg1, %arg0 : i32, i32
  }
  func.func @transform_2(%arg0: i32, %arg1: i32) -> (i32, i32) {
    %c0_i32 = arith.constant 0 : i32
    %c0_i32_0 = arith.constant 0 : i32
    return %c0_i32, %arg0 : i32, i32
  }
  func.func @transform_3(%arg0: i32, %arg1: i32) -> (i32, i32) {
    %c0_i32 = arith.constant 0 : i32
    %c0_i32_0 = arith.constant 0 : i32
    return %c0_i32, %arg0 : i32, i32
  }
  func.func @transform_4(%arg0: i32, %arg1: i32) -> (i32, i32) {
    %c0_i32 = arith.constant 0 : i32
    %c0_i32_0 = arith.constant 0 : i32
    return %c0_i32, %arg0 : i32, i32
  }
}

</mosaic_0001>

<llo_original>
// kernel: tpu_custom_call.1
$region0: #{tpu_custom_call.1}
  #allocation0 [shape = 'u32[]', space=smem, size = 0x4, offset = 0x4, fixed_abs, tag = 'smem constant byte address 0x4 - core index']
  #allocation1 [shape = 'u32[72,128]{1,0:T(1,128)}', space=vmem, size = 0x9000, scoped, tag = 'internal scratch']
  #allocation2 [shape = 'f32[512,128]{1,0:T(8,128)}', space=vmem, size = 0x40000, scoped, tag = 'scratch operand']
  %s0 = inlined_call_operand.hbm [shape: bf16[512,128], index: 0, kind: input, shape index: {}]
  %s1 = inlined_call_operand.hbm [shape: bf16[128,128], index: 1, kind: input, shape index: {}]
  %s2 = inlined_call_operand.vmem [shape: f32[1,128], index: 2, kind: input, shape index: {}]
  %s3 = inlined_call_operand.vmem [shape: f32[1,128], index: 3, kind: input, shape index: {}]
  %s4 = inlined_call_operand.hbm [shape: bf16[512,128], index: 4, kind: output, shape index: {}]
  %s5 = sld [smem:[#allocation0]]
  $region42: #{tpu_custom_call.1} parent=0
    _
  %s7 = ssub.s32 1, %s5
  %s8 = scalar_select 0, %s7, %s5
  $region1: #{tpu_custom_call.1} parent=0
    #allocation3 [shape = 'u8[131072]{0}', space=vmem, size = 0x20000, scoped, tag = 'input window, operand 0, single buffered']
    #allocation4 [shape = 's32[1]{0}', space=sflag, size = 0x4, scoped, tag = 'scoped memory for tpu_custom_call.1']
    #allocation5 [shape = 's32[1]{0}', space=sflag, size = 0x4, scoped, tag = 'scoped memory for tpu_custom_call.1']
    #allocation6 [shape = 'u8[32768]{0}', space=vmem, size = 0x8000, scoped, tag = 'input window, operand 1, single buffered']
    #allocation7 [shape = 's32[1]{0}', space=sflag, size = 0x4, scoped, tag = 'scoped memory for tpu_custom_call.1']
    #allocation8 [shape = 'u8[131072]{0}', space=vmem, size = 0x20000, scoped, tag = 'output window, operand 0, single buffered']
    %9 = vsyncpa [#allocation4], 0
    %10 = vsyncpa [#allocation7], 0
    %11 = vsyncpa [#allocation5], 0
    // Predicated region
    $region2: #{tpu_custom_call.1} parent=1 // pred_check
      _
    $region3: #{tpu_custom_call.1} parent=1 // pred_check_branch
      %13 = sbr.rel (0) target = $region5
    $region4: #{tpu_custom_call.1} parent=1 // pred_region
      %15 = vsyncadd [#allocation4], 0
      %s16 = sshll.u32 %s0, 4
      %s17 = int_to_ptr.hbm [resolvable:$true] %s16
      %s18 = sshll.u32 [#allocation3], 4
      %s19 = int_to_ptr.vmem [resolvable:$true] %s18
      %24 = dma.hbm_to_vmem [thread:$0]  %s17, 4096, %s19, [#allocation4], 64, 64, 4
    $region5: #{tpu_custom_call.1} parent=1 // pred_fallthru
      _
    // Predicated region
    $region6: #{tpu_custom_call.1} parent=1 // pred_check
      _
    $region7: #{tpu_custom_call.1} parent=1 // pred_check_branch
      %26 = sbr.rel (0) target = $region9
    $region8: #{tpu_custom_call.1} parent=1 // pred_region
      %28 = vsyncadd [#allocation7], 0
      %s29 = sshll.u32 %s1, 4
      %s30 = int_to_ptr.hbm [resolvable:$true] %s29
      %s31 = sshll.u32 [#allocation6], 4
      %s32 = int_to_ptr.vmem [resolvable:$true] %s31
      %37 = dma.hbm_to_vmem [thread:$0]  %s30, 1024, %s32, [#allocation7], 64, 64, 4
    $region9: #{tpu_custom_call.1} parent=1 // pred_fallthru
      _
    // Predicated region
    $region10: #{tpu_custom_call.1} parent=1 // pred_check
      _
    $region11: #{tpu_custom_call.1} parent=1 // pred_check_branch
      %39 = sbr.rel (0) target = $region13
    $region12: #{tpu_custom_call.1} parent=1 // pred_region
      _
    $region13: #{tpu_custom_call.1} parent=1 // pred_fallthru
      _
    // Predicated region
    $region14: #{tpu_custom_call.1} parent=1 // pred_check
      _
    $region15: #{tpu_custom_call.1} parent=1 // pred_check_branch
      %41 = sbr.rel (0) target = $region17
    $region16: #{tpu_custom_call.1} parent=1 // pred_region
      _
    $region17: #{tpu_custom_call.1} parent=1 // pred_fallthru
      _
    // Predicated region
    $region18: #{tpu_custom_call.1} parent=1 // pred_check
      _
    $region19: #{tpu_custom_call.1} parent=1 // pred_check_branch
      %43 = sbr.rel (0) target = $region21
    $region20: #{tpu_custom_call.1} parent=1 // pred_region
      %45 = dma.done [#allocation4], 4096
    $region21: #{tpu_custom_call.1} parent=1 // pred_fallthru
      _
    // Predicated region
    $region22: #{tpu_custom_call.1} parent=1 // pred_check
      _
    $region23: #{tpu_custom_call.1} parent=1 // pred_check_branch
      %47 = sbr.rel (0) target = $region25
    $region24: #{tpu_custom_call.1} parent=1 // pred_region
      %49 = dma.done [#allocation7], 1024
    $region25: #{tpu_custom_call.1} parent=1 // pred_fallthru
      _
    %p50 = scmp.eq.s32.totalorder 0, 0
    // Predicated region
    $region26: #{tpu_custom_call.1} parent=1 // pred_check
      %p51 = pneg %p50
    $region27: #{tpu_custom_call.1} parent=1 // pred_check_branch
      %53 = sbr.rel (%p51) target = $region29
    $region28: #{tpu_custom_call.1} parent=1 // pred_region
      %54 = vst [vmem:[#allocation2] sm:$0xff] 0.0
      %55 = vst [vmem:[#allocation2 + $0x8] sm:$0xff] 0.0
      %56 = vst [vmem:[#allocation2 + $0x10] sm:$0xff] 0.0
      %57 = vst [vmem:[#allocation2 + $0x18] sm:$0xff] 0.0
      %58 = vst [vmem:[#allocation2 + $0x20] sm:$0xff] 0.0
      %59 = vst [vmem:[#allocation2 + $0x28] sm:$0xff] 0.0
      %60 = vst [vmem:[#allocation2 + $0x30] sm:$0xff] 0.0
      %61 = vst [vmem:[#allocation2 + $0x38] sm:$0xff] 0.0
      %62 = vst [vmem:[#allocation2 + $0x40] sm:$0xff] 0.0
      %63 = vst [vmem:[#allocation2 + $0x48] sm:$0xff] 0.0
      %64 = vst [vmem:[#allocation2 + $0x50] sm:$0xff] 0.0
      %65 = vst [vmem:[#allocation2 + $0x58] sm:$0xff] 0.0
      %66 = vst [vmem:[#allocation2 + $0x60] sm:$0xff] 0.0
      %67 = vst [vmem:[#allocation2 + $0x68] sm:$0xff] 0.0
      %68 = vst [vmem:[#allocation2 + $0x70] sm:$0xff] 0.0
      %69 = vst [vmem:[#allocation2 + $0x78] sm:$0xff] 0.0
      %70 = vst [vmem:[#allocation2 + $0x80] sm:$0xff] 0.0
      %71 = vst [vmem:[#allocation2 + $0x88] sm:$0xff] 0.0
      %72 = vst [vmem:[#allocation2 + $0x90] sm:$0xff] 0.0
      %73 = vst [vmem:[#allocation2 + $0x98] sm:$0xff] 0.0
      %74 = vst [vmem:[#allocation2 + $0xa0] sm:$0xff] 0.0
      %75 = vst [vmem:[#allocation2 + $0xa8] sm:$0xff] 0.0
      %76 = vst [vmem:[#allocation2 + $0xb0] sm:$0xff] 0.0
      %77 = vst [vmem:[#allocation2 + $0xb8] sm:$0xff] 0.0
      %78 = vst [vmem:[#allocation2 + $0xc0] sm:$0xff] 0.0
      %79 = vst [vmem:[#allocation2 + $0xc8] sm:$0xff] 0.0
      %80 = vst [vmem:[#allocation2 + $0xd0] sm:$0xff] 0.0
      %81 = vst [vmem:[#allocation2 + $0xd8] sm:$0xff] 0.0
      %82 = vst [vmem:[#allocation2 + $0xe0] sm:$0xff] 0.0
      %83 = vst [vmem:[#allocation2 + $0xe8] sm:$0xff] 0.0
      %84 = vst [vmem:[#allocation2 + $0xf0] sm:$0xff] 0.0
      %85 = vst [vmem:[#allocation2 + $0xf8] sm:$0xff] 0.0
      %86 = vst [vmem:[#allocation2 + $0x100] sm:$0xff] 0.0
      %87 = vst [vmem:[#allocation2 + $0x108] sm:$0xff] 0.0
      %88 = vst [vmem:[#allocation2 + $0x110] sm:$0xff] 0.0
      %89 = vst [vmem:[#allocation2 + $0x118] sm:$0xff] 0.0
      %90 = vst [vmem:[#allocation2 + $0x120] sm:$0xff] 0.0
      %91 = vst [vmem:[#allocation2 + $0x128] sm:$0xff] 0.0
      %92 = vst [vmem:[#allocation2 + $0x130] sm:$0xff] 0.0
      %93 = vst [vmem:[#allocation2 + $0x138] sm:$0xff] 0.0
      %94 = vst [vmem:[#allocation2 + $0x140] sm:$0xff] 0.0
      %95 = vst [vmem:[#allocation2 + $0x148] sm:$0xff] 0.0
      %96 = vst [vmem:[#allocation2 + $0x150] sm:$0xff] 0.0
      %97 = vst [vmem:[#allocation2 + $0x158] sm:$0xff] 0.0
      %98 = vst [vmem:[#allocation2 + $0x160] sm:$0xff] 0.0
      %99 = vst [vmem:[#allocation2 + $0x168] sm:$0xff] 0.0
      %100 = vst [vmem:[#allocation2 + $0x170] sm:$0xff] 0.0
      %101 = vst [vmem:[#allocation2 + $0x178] sm:$0xff] 0.0
      %102 = vst [vmem:[#allocation2 + $0x180] sm:$0xff] 0.0
      %103 = vst [vmem:[#allocation2 + $0x188] sm:$0xff] 0.0
      %104 = vst [vmem:[#allocation2 + $0x190] sm:$0xff] 0.0
      %105 = vst [vmem:[#allocation2 + $0x198] sm:$0xff] 0.0
      %106 = vst [vmem:[#allocation2 + $0x1a0] sm:$0xff] 0.0
      %107 = vst [vmem:[#allocation2 + $0x1a8] sm:$0xff] 0.0
      %108 = vst [vmem:[#allocation2 + $0x1b0] sm:$0xff] 0.0
      %109 = vst [vmem:[#allocation2 + $0x1b8] sm:$0xff] 0.0
      %110 = vst [vmem:[#allocation2 + $0x1c0] sm:$0xff] 0.0
      %111 = vst [vmem:[#allocation2 + $0x1c8] sm:$0xff] 0.0
      %112 = vst [vmem:[#allocation2 + $0x1d0] sm:$0xff] 0.0
      %113 = vst [vmem:[#allocation2 + $0x1d8] sm:$0xff] 0.0
      %114 = vst [vmem:[#allocation2 + $0x1e0] sm:$0xff] 0.0
      %115 = vst [vmem:[#allocation2 + $0x1e8] sm:$0xff] 0.0
      %116 = vst [vmem:[#allocation2 + $0x1f0] sm:$0xff] 0.0
      %117 = vst [vmem:[#allocation2 + $0x1f8] sm:$0xff] 0.0
    $region29: #{tpu_custom_call.1} parent=1 // pred_fallthru
      _
    %v118 = vld [vmem:[#allocation2] sm:$0xff]
    %v119 = vld [vmem:[#allocation2 + $0x8] sm:$0xff]
    %v120 = vld [vmem:[#allocation2 + $0x10] sm:$0xff]
    %v121 = vld [vmem:[#allocation2 + $0x18] sm:$0xff]
    %v122 = vld [vmem:[#allocation2 + $0x20] sm:$0xff]
    %v123 = vld [vmem:[#allocation2 + $0x28] sm:$0xff]
    %v124 = vld [vmem:[#allocation2 + $0x30] sm:$0xff]
    %v125 = vld [vmem:[#allocation2 + $0x38] sm:$0xff]
    %v126 = vld [vmem:[#allocation2 + $0x40] sm:$0xff]
    %v127 = vld [vmem:[#allocation2 + $0x48] sm:$0xff]
    %v128 = vld [vmem:[#allocation2 + $0x50] sm:$0xff]
    %v129 = vld [vmem:[#allocation2 + $0x58] sm:$0xff]
    %v130 = vld [vmem:[#allocation2 + $0x60] sm:$0xff]
    %v131 = vld [vmem:[#allocation2 + $0x68] sm:$0xff]
    %v132 = vld [vmem:[#allocation2 + $0x70] sm:$0xff]
    %v133 = vld [vmem:[#allocation2 + $0x78] sm:$0xff]
    %v134 = vld [vmem:[#allocation2 + $0x80] sm:$0xff]
    %v135 = vld [vmem:[#allocation2 + $0x88] sm:$0xff]
    %v136 = vld [vmem:[#allocation2 + $0x90] sm:$0xff]
    %v137 = vld [vmem:[#allocation2 + $0x98] sm:$0xff]
    %v138 = vld [vmem:[#allocation2 + $0xa0] sm:$0xff]
    %v139 = vld [vmem:[#allocation2 + $0xa8] sm:$0xff]
    %v140 = vld [vmem:[#allocation2 + $0xb0] sm:$0xff]
    %v141 = vld [vmem:[#allocation2 + $0xb8] sm:$0xff]
    %v142 = vld [vmem:[#allocation2 + $0xc0] sm:$0xff]
    %v143 = vld [vmem:[#allocation2 + $0xc8] sm:$0xff]
    %v144 = vld [vmem:[#allocation2 + $0xd0] sm:$0xff]
    %v145 = vld [vmem:[#allocation2 + $0xd8] sm:$0xff]
    %v146 = vld [vmem:[#allocation2 + $0xe0] sm:$0xff]
    %v147 = vld [vmem:[#allocation2 + $0xe8] sm:$0xff]
    %v148 = vld [vmem:[#allocation2 + $0xf0] sm:$0xff]
    %v149 = vld [vmem:[#allocation2 + $0xf8] sm:$0xff]
    %v150 = vld [vmem:[#allocation2 + $0x100] sm:$0xff]
    %v151 = vld [vmem:[#allocation2 + $0x108] sm:$0xff]
    %v152 = vld [vmem:[#allocation2 + $0x110] sm:$0xff]
    %v153 = vld [vmem:[#allocation2 + $0x118] sm:$0xff]
    %v154 = vld [vmem:[#allocation2 + $0x120] sm:$0xff]
    %v155 = vld [vmem:[#allocation2 + $0x128] sm:$0xff]
    %v156 = vld [vmem:[#allocation2 + $0x130] sm:$0xff]
    %v157 = vld [vmem:[#allocation2 + $0x138] sm:$0xff]
    %v158 = vld [vmem:[#allocation2 + $0x140] sm:$0xff]
    %v159 = vld [vmem:[#allocation2 + $0x148] sm:$0xff]
    %v160 = vld [vmem:[#allocation2 + $0x150] sm:$0xff]
    %v161 = vld [vmem:[#allocation2 + $0x158] sm:$0xff]
    %v162 = vld [vmem:[#allocation2 + $0x160] sm:$0xff]
    %v163 = vld [vmem:[#allocation2 + $0x168] sm:$0xff]
    %v164 = vld [vmem:[#allocation2 + $0x170] sm:$0xff]
    %v165 = vld [vmem:[#allocation2 + $0x178] sm:$0xff]
    %v166 = vld [vmem:[#allocation2 + $0x180] sm:$0xff]
    %v167 = vld [vmem:[#allocation2 + $0x188] sm:$0xff]
    %v168 = vld [vmem:[#allocation2 + $0x190] sm:$0xff]
    %v169 = vld [vmem:[#allocation2 + $0x198] sm:$0xff]
    %v170 = vld [vmem:[#allocation2 + $0x1a0] sm:$0xff]
    %v171 = vld [vmem:[#allocation2 + $0x1a8] sm:$0xff]
    %v172 = vld [vmem:[#allocation2 + $0x1b0] sm:$0xff]
    %v173 = vld [vmem:[#allocation2 + $0x1b8] sm:$0xff]
    %v174 = vld [vmem:[#allocation2 + $0x1c0] sm:$0xff]
    %v175 = vld [vmem:[#allocation2 + $0x1c8] sm:$0xff]
    %v176 = vld [vmem:[#allocation2 + $0x1d0] sm:$0xff]
    %v177 = vld [vmem:[#allocation2 + $0x1d8] sm:$0xff]
    %v178 = vld [vmem:[#allocation2 + $0x1e0] sm:$0xff]
    %v179 = vld [vmem:[#allocation2 + $0x1e8] sm:$0xff]
    %v180 = vld [vmem:[#allocation2 + $0x1f0] sm:$0xff]
    %v181 = vld [vmem:[#allocation2 + $0x1f8] sm:$0xff]
    %v182 = vld [vmem:[#allocation3] sm:$0xf]
    %v183 = vld [vmem:[#allocation3 + $0x4] sm:$0xf]
    %v184 = vld [vmem:[#allocation3 + $0x8] sm:$0xf]
    %v185 = vld [vmem:[#allocation3 + $0xc] sm:$0xf]
    %v186 = vld [vmem:[#allocation3 + $0x10] sm:$0xf]
    %v187 = vld [vmem:[#allocation3 + $0x14] sm:$0xf]
    %v188 = vld [vmem:[#allocation3 + $0x18] sm:$0xf]
    %v189 = vld [vmem:[#allocation3 + $0x1c] sm:$0xf]
    %v190 = vld [vmem:[#allocation3 + $0x20] sm:$0xf]
    %v191 = vld [vmem:[#allocation3 + $0x24] sm:$0xf]
    %v192 = vld [vmem:[#allocation3 + $0x28] sm:$0xf]
    %v193 = vld [vmem:[#allocation3 + $0x2c] sm:$0xf]
    %v194 = vld [vmem:[#allocation3 + $0x30] sm:$0xf]
    %v195 = vld [vmem:[#allocation3 + $0x34] sm:$0xf]
    %v196 = vld [vmem:[#allocation3 + $0x38] sm:$0xf]
    %v197 = vld [vmem:[#allocation3 + $0x3c] sm:$0xf]
    %v198 = vld [vmem:[#allocation3 + $0x40] sm:$0xf]
    %v199 = vld [vmem:[#allocation3 + $0x44] sm:$0xf]
    %v200 = vld [vmem:[#allocation3 + $0x48] sm:$0xf]
    %v201 = vld [vmem:[#allocation3 + $0x4c] sm:$0xf]
    %v202 = vld [vmem:[#allocation3 + $0x50] sm:$0xf]
    %v203 = vld [vmem:[#allocation3 + $0x54] sm:$0xf]
    %v204 = vld [vmem:[#allocation3 + $0x58] sm:$0xf]
    %v205 = vld [vmem:[#allocation3 + $0x5c] sm:$0xf]
    %v206 = vld [vmem:[#allocation3 + $0x60] sm:$0xf]
    %v207 = vld [vmem:[#allocation3 + $0x64] sm:$0xf]
    %v208 = vld [vmem:[#allocation3 + $0x68] sm:$0xf]
    %v209 = vld [vmem:[#allocation3 + $0x6c] sm:$0xf]
    %v210 = vld [vmem:[#allocation3 + $0x70] sm:$0xf]
    %v211 = vld [vmem:[#allocation3 + $0x74] sm:$0xf]
    %v212 = vld [vmem:[#allocation3 + $0x78] sm:$0xf]
    %v213 = vld [vmem:[#allocation3 + $0x7c] sm:$0xf]
    %v214 = vld [vmem:[#allocation3 + $0x80] sm:$0xf]
    %v215 = vld [vmem:[#allocation3 + $0x84] sm:$0xf]
    %v216 = vld [vmem:[#allocation3 + $0x88] sm:$0xf]
    %v217 = vld [vmem:[#allocation3 + $0x8c] sm:$0xf]
    %v218 = vld [vmem:[#allocation3 + $0x90] sm:$0xf]
    %v219 = vld [vmem:[#allocation3 + $0x94] sm:$0xf]
    %v220 = vld [vmem:[#allocation3 + $0x98] sm:$0xf]
    %v221 = vld [vmem:[#allocation3 + $0x9c] sm:$0xf]
    %v222 = vld [vmem:[#allocation3 + $0xa0] sm:$0xf]
    %v223 = vld [vmem:[#allocation3 + $0xa4] sm:$0xf]
    %v224 = vld [vmem:[#allocation3 + $0xa8] sm:$0xf]
    %v225 = vld [vmem:[#allocation3 + $0xac] sm:$0xf]
    %v226 = vld [vmem:[#allocation3 + $0xb0] sm:$0xf]
    %v227 = vld [vmem:[#allocation3 + $0xb4] sm:$0xf]
    %v228 = vld [vmem:[#allocation3 + $0xb8] sm:$0xf]
    %v229 = vld [vmem:[#allocation3 + $0xbc] sm:$0xf]
    %v230 = vld [vmem:[#allocation3 + $0xc0] sm:$0xf]
    %v231 = vld [vmem:[#allocation3 + $0xc4] sm:$0xf]
    %v232 = vld [vmem:[#allocation3 + $0xc8] sm:$0xf]
    %v233 = vld [vmem:[#allocation3 + $0xcc] sm:$0xf]
    %v234 = vld [vmem:[#allocation3 + $0xd0] sm:$0xf]
    %v235 = vld [vmem:[#allocation3 + $0xd4] sm:$0xf]
    %v236 = vld [vmem:[#allocation3 + $0xd8] sm:$0xf]
    %v237 = vld [vmem:[#allocation3 + $0xdc] sm:$0xf]
    %v238 = vld [vmem:[#allocation3 + $0xe0] sm:$0xf]
    %v239 = vld [vmem:[#allocation3 + $0xe4] sm:$0xf]
    %v240 = vld [vmem:[#allocation3 + $0xe8] sm:$0xf]
    %v241 = vld [vmem:[#allocation3 + $0xec] sm:$0xf]
    %v242 = vld [vmem:[#allocation3 + $0xf0] sm:$0xf]
    %v243 = vld [vmem:[#allocation3 + $0xf4] sm:$0xf]
    %v244 = vld [vmem:[#allocation3 + $0xf8] sm:$0xf]
    %v245 = vld [vmem:[#allocation3 + $0xfc] sm:$0xf]
    %v246 = vld [vmem:[#allocation6] sm:$0xf]
    %v247 = vld [vmem:[#allocation6 + $0x4] sm:$0xf]
    %v248 = vld [vmem:[#allocation6 + $0x8] sm:$0xf]
    %v249 = vld [vmem:[#allocation6 + $0xc] sm:$0xf]
    %v250 = vld [vmem:[#allocation6 + $0x10] sm:$0xf]
    %v251 = vld [vmem:[#allocation6 + $0x14] sm:$0xf]
    %v252 = vld [vmem:[#allocation6 + $0x18] sm:$0xf]
    %v253 = vld [vmem:[#allocation6 + $0x1c] sm:$0xf]
    %v254 = vld [vmem:[#allocation6 + $0x20] sm:$0xf]
    %v255 = vld [vmem:[#allocation6 + $0x24] sm:$0xf]
    %v256 = vld [vmem:[#allocation6 + $0x28] sm:$0xf]
    %v257 = vld [vmem:[#allocation6 + $0x2c] sm:$0xf]
    %v258 = vld [vmem:[#allocation6 + $0x30] sm:$0xf]
    %v259 = vld [vmem:[#allocation6 + $0x34] sm:$0xf]
    %v260 = vld [vmem:[#allocation6 + $0x38] sm:$0xf]
    %v261 = vld [vmem:[#allocation6 + $0x3c] sm:$0xf]
    %v326 = vunpack.c.l.b16 %v182
    %v327 = vunpack.c.l.b16 %v183
    %v328 = vunpack.c.l.b16 %v184
    %v329 = vunpack.c.l.b16 %v185
    %v330 = vunpack.c.l.b16 %v186
    %v331 = vunpack.c.l.b16 %v187
    %v332 = vunpack.c.l.b16 %v188
    %v333 = vunpack.c.l.b16 %v189
    %v334 = vunpack.c.l.b16 %v190
    %v335 = vunpack.c.l.b16 %v191
    %v336 = vunpack.c.l.b16 %v192
    %v337 = vunpack.c.l.b16 %v193
    %v338 = vunpack.c.l.b16 %v194
    %v339 = vunpack.c.l.b16 %v195
    %v340 = vunpack.c.l.b16 %v196
    %v341 = vunpack.c.l.b16 %v197
    %v342 = vunpack.c.l.b16 %v198
    %v343 = vunpack.c.l.b16 %v199
    %v344 = vunpack.c.l.b16 %v200
    %v345 = vunpack.c.l.b16 %v201
    %v346 = vunpack.c.l.b16 %v202
    %v347 = vunpack.c.l.b16 %v203
    %v348 = vunpack.c.l.b16 %v204
    %v349 = vunpack.c.l.b16 %v205
    %v350 = vunpack.c.l.b16 %v206
    %v351 = vunpack.c.l.b16 %v207
    %v352 = vunpack.c.l.b16 %v208
    %v353 = vunpack.c.l.b16 %v209
    %v354 = vunpack.c.l.b16 %v210
    %v355 = vunpack.c.l.b16 %v211
    %v356 = vunpack.c.l.b16 %v212
    %v357 = vunpack.c.l.b16 %v213
    %v358 = vunpack.c.l.b16 %v214
    %v359 = vunpack.c.l.b16 %v215
    %v360 = vunpack.c.l.b16 %v216
    %v361 = vunpack.c.l.b16 %v217
    %v362 = vunpack.c.l.b16 %v218
    %v363 = vunpack.c.l.b16 %v219
    %v364 = vunpack.c.l.b16 %v220
    %v365 = vunpack.c.l.b16 %v221
    %v366 = vunpack.c.l.b16 %v222
    %v367 = vunpack.c.l.b16 %v223
    %v368 = vunpack.c.l.b16 %v224
    %v369 = vunpack.c.l.b16 %v225
    %v370 = vunpack.c.l.b16 %v226
    %v371 = vunpack.c.l.b16 %v227
    %v372 = vunpack.c.l.b16 %v228
    %v373 = vunpack.c.l.b16 %v229
    %v374 = vunpack.c.l.b16 %v230
    %v375 = vunpack.c.l.b16 %v231
    %v376 = vunpack.c.l.b16 %v232
    %v377 = vunpack.c.l.b16 %v233
    %v378 = vunpack.c.l.b16 %v234
    %v379 = vunpack.c.l.b16 %v235
    %v380 = vunpack.c.l.b16 %v236
    %v381 = vunpack.c.l.b16 %v237
    %v382 = vunpack.c.l.b16 %v238
    %v383 = vunpack.c.l.b16 %v239
    %v384 = vunpack.c.l.b16 %v240
    %v385 = vunpack.c.l.b16 %v241
    %v386 = vunpack.c.l.b16 %v242
    %v387 = vunpack.c.l.b16 %v243
    %v388 = vunpack.c.l.b16 %v244
    %v389 = vunpack.c.l.b16 %v245
    %v390 = vpack.c.b16 %v327, %v326
    %v391 = vpack.c.b16 %v329, %v328
    %v392 = vpack.c.b16 %v331, %v330
    %v393 = vpack.c.b16 %v333, %v332
    %v394 = vpack.c.b16 %v335, %v334
    %v395 = vpack.c.b16 %v337, %v336
    %v396 = vpack.c.b16 %v339, %v338
    %v397 = vpack.c.b16 %v341, %v340
    %v398 = vpack.c.b16 %v343, %v342
    %v399 = vpack.c.b16 %v345, %v344
    %v400 = vpack.c.b16 %v347, %v346
    %v401 = vpack.c.b16 %v349, %v348
    %v402 = vpack.c.b16 %v351, %v350
    %v403 = vpack.c.b16 %v353, %v352
    %v404 = vpack.c.b16 %v355, %v354
    %v405 = vpack.c.b16 %v357, %v356
    %v406 = vpack.c.b16 %v359, %v358
    %v407 = vpack.c.b16 %v361, %v360
    %v408 = vpack.c.b16 %v363, %v362
    %v409 = vpack.c.b16 %v365, %v364
    %v410 = vpack.c.b16 %v367, %v366
    %v411 = vpack.c.b16 %v369, %v368
    %v412 = vpack.c.b16 %v371, %v370
    %v413 = vpack.c.b16 %v373, %v372
    %v414 = vpack.c.b16 %v375, %v374
    %v415 = vpack.c.b16 %v377, %v376
    %v416 = vpack.c.b16 %v379, %v378
    %v417 = vpack.c.b16 %v381, %v380
    %v418 = vpack.c.b16 %v383, %v382
    %v419 = vpack.c.b16 %v385, %v384
    %v420 = vpack.c.b16 %v387, %v386
    %v421 = vpack.c.b16 %v389, %v388
    %v470 = vunpack.c.l.b16 %v246
    %v471 = vunpack.c.l.b16 %v247
    %v472 = vunpack.c.l.b16 %v248
    %v473 = vunpack.c.l.b16 %v249
    %v474 = vunpack.c.l.b16 %v250
    %v475 = vunpack.c.l.b16 %v251
    %v476 = vunpack.c.l.b16 %v252
    %v477 = vunpack.c.l.b16 %v253
    %v478 = vunpack.c.l.b16 %v254
    %v479 = vunpack.c.l.b16 %v255
    %v480 = vunpack.c.l.b16 %v256
    %v481 = vunpack.c.l.b16 %v257
    %v482 = vunpack.c.l.b16 %v258
    %v483 = vunpack.c.l.b16 %v259
    %v484 = vunpack.c.l.b16 %v260
    %v485 = vunpack.c.l.b16 %v261
    %v486 = vpack.c.b16 %v471, %v470
    %v487 = vpack.c.b16 %v473, %v472
    %v488 = vpack.c.b16 %v475, %v474
    %v489 = vpack.c.b16 %v477, %v476
    %v490 = vpack.c.b16 %v479, %v478
    %v491 = vpack.c.b16 %v481, %v480
    %v492 = vpack.c.b16 %v483, %v482
    %v493 = vpack.c.b16 %v485, %v484
    %502 = vmatpush.bf16.msra.mxu0 %v493
    %503 = vmatpush.bf16.msra.mxu0 %v492
    %504 = vmatpush.bf16.msra.mxu0 %v491
    %505 = vmatpush.bf16.msra.mxu0 %v490
    %506 = vmatpush.bf16.msra.mxu0 %v489
    %507 = vmatpush.bf16.msra.mxu0 %v488
    %508 = vmatpush.bf16.msra.mxu0 %v487
    %509 = vmatpush.bf16.msra.mxu0 %v486
    %510 = vmatmul.bf16.gmra.mxu0 %v390
    %v511 = vpop.f32.mrf.mxu0
    %v512 = vadd.f32 0.0, %v511
    %v513 = vpop.f32.mrf.mxu0
    %v514 = vadd.f32 0.0, %v513
    %515 = vmatmul.bf16.gmra.mxu0 %v391
    %v516 = vpop.f32.mrf.mxu0
    %v517 = vadd.f32 0.0, %v516
    %v518 = vpop.f32.mrf.mxu0
    %v519 = vadd.f32 0.0, %v518
    %520 = vmatmul.bf16.gmra.mxu0 %v392
    %v521 = vpop.f32.mrf.mxu0
    %v522 = vadd.f32 0.0, %v521
    %v523 = vpop.f32.mrf.mxu0
    %v524 = vadd.f32 0.0, %v523
    %525 = vmatmul.bf16.gmra.mxu0 %v393
    %v526 = vpop.f32.mrf.mxu0
    %v527 = vadd.f32 0.0, %v526
    %v528 = vpop.f32.mrf.mxu0
    %v529 = vadd.f32 0.0, %v528
    %530 = vmatmul.bf16.gmra.mxu0 %v394
    %v531 = vpop.f32.mrf.mxu0
    %v532 = vadd.f32 0.0, %v531
    %v533 = vpop.f32.mrf.mxu0
    %v534 = vadd.f32 0.0, %v533
    %535 = vmatmul.bf16.gmra.mxu0 %v395
    %v536 = vpop.f32.mrf.mxu0
    %v537 = vadd.f32 0.0, %v536
    %v538 = vpop.f32.mrf.mxu0
    %v539 = vadd.f32 0.0, %v538
    %540 = vmatmul.bf16.gmra.mxu0 %v396
    %v541 = vpop.f32.mrf.mxu0
    %v542 = vadd.f32 0.0, %v541
    %v543 = vpop.f32.mrf.mxu0
    %v544 = vadd.f32 0.0, %v543
    %545 = vmatmul.bf16.gmra.mxu0 %v397
    %v546 = vpop.f32.mrf.mxu0
    %v547 = vadd.f32 0.0, %v546
    %v548 = vpop.f32.mrf.mxu0
    %v549 = vadd.f32 0.0, %v548
    %550 = vmatmul.bf16.gmra.mxu0 %v398
    %v551 = vpop.f32.mrf.mxu0
    %v552 = vadd.f32 0.0, %v551
    %v553 = vpop.f32.mrf.mxu0
    %v554 = vadd.f32 0.0, %v553
    %555 = vmatmul.bf16.gmra.mxu0 %v399
    %v556 = vpop.f32.mrf.mxu0
    %v557 = vadd.f32 0.0, %v556
    %v558 = vpop.f32.mrf.mxu0
    %v559 = vadd.f32 0.0, %v558
    %560 = vmatmul.bf16.gmra.mxu0 %v400
    %v561 = vpop.f32.mrf.mxu0
    %v562 = vadd.f32 0.0, %v561
    %v563 = vpop.f32.mrf.mxu0
    %v564 = vadd.f32 0.0, %v563
    %565 = vmatmul.bf16.gmra.mxu0 %v401
    %v566 = vpop.f32.mrf.mxu0
    %v567 = vadd.f32 0.0, %v566
    %v568 = vpop.f32.mrf.mxu0
    %v569 = vadd.f32 0.0, %v568
    %570 = vmatmul.bf16.gmra.mxu0 %v402
    %v571 = vpop.f32.mrf.mxu0
    %v572 = vadd.f32 0.0, %v571
    %v573 = vpop.f32.mrf.mxu0
    %v574 = vadd.f32 0.0, %v573
    %575 = vmatmul.bf16.gmra.mxu0 %v403
    %v576 = vpop.f32.mrf.mxu0
    %v577 = vadd.f32 0.0, %v576
    %v578 = vpop.f32.mrf.mxu0
    %v579 = vadd.f32 0.0, %v578
    %580 = vmatmul.bf16.gmra.mxu0 %v404
    %v581 = vpop.f32.mrf.mxu0
    %v582 = vadd.f32 0.0, %v581
    %v583 = vpop.f32.mrf.mxu0
    %v584 = vadd.f32 0.0, %v583
    %585 = vmatmul.bf16.gmra.mxu0 %v405
    %v586 = vpop.f32.mrf.mxu0
    %v587 = vadd.f32 0.0, %v586
    %v588 = vpop.f32.mrf.mxu0
    %v589 = vadd.f32 0.0, %v588
    %590 = vmatmul.bf16.gmra.mxu0 %v406
    %v591 = vpop.f32.mrf.mxu0
    %v592 = vadd.f32 0.0, %v591
    %v593 = vpop.f32.mrf.mxu0
    %v594 = vadd.f32 0.0, %v593
    %595 = vmatmul.bf16.gmra.mxu0 %v407
    %v596 = vpop.f32.mrf.mxu0
    %v597 = vadd.f32 0.0, %v596
    %v598 = vpop.f32.mrf.mxu0
    %v599 = vadd.f32 0.0, %v598
    %600 = vmatmul.bf16.gmra.mxu0 %v408
    %v601 = vpop.f32.mrf.mxu0
    %v602 = vadd.f32 0.0, %v601
    %v603 = vpop.f32.mrf.mxu0
    %v604 = vadd.f32 0.0, %v603
    %605 = vmatmul.bf16.gmra.mxu0 %v409
    %v606 = vpop.f32.mrf.mxu0
    %v607 = vadd.f32 0.0, %v606
    %v608 = vpop.f32.mrf.mxu0
    %v609 = vadd.f32 0.0, %v608
    %610 = vmatmul.bf16.gmra.mxu0 %v410
    %v611 = vpop.f32.mrf.mxu0
    %v612 = vadd.f32 0.0, %v611
    %v613 = vpop.f32.mrf.mxu0
    %v614 = vadd.f32 0.0, %v613
    %615 = vmatmul.bf16.gmra.mxu0 %v411
    %v616 = vpop.f32.mrf.mxu0
    %v617 = vadd.f32 0.0, %v616
    %v618 = vpop.f32.mrf.mxu0
    %v619 = vadd.f32 0.0, %v618
    %620 = vmatmul.bf16.gmra.mxu0 %v412
    %v621 = vpop.f32.mrf.mxu0
    %v622 = vadd.f32 0.0, %v621
    %v623 = vpop.f32.mrf.mxu0
    %v624 = vadd.f32 0.0, %v623
    %625 = vmatmul.bf16.gmra.mxu0 %v413
    %v626 = vpop.f32.mrf.mxu0
    %v627 = vadd.f32 0.0, %v626
    %v628 = vpop.f32.mrf.mxu0
    %v629 = vadd.f32 0.0, %v628
    %630 = vmatmul.bf16.gmra.mxu0 %v414
    %v631 = vpop.f32.mrf.mxu0
    %v632 = vadd.f32 0.0, %v631
    %v633 = vpop.f32.mrf.mxu0
    %v634 = vadd.f32 0.0, %v633
    %635 = vmatmul.bf16.gmra.mxu0 %v415
    %v636 = vpop.f32.mrf.mxu0
    %v637 = vadd.f32 0.0, %v636
    %v638 = vpop.f32.mrf.mxu0
    %v639 = vadd.f32 0.0, %v638
    %640 = vmatmul.bf16.gmra.mxu0 %v416
    %v641 = vpop.f32.mrf.mxu0
    %v642 = vadd.f32 0.0, %v641
    %v643 = vpop.f32.mrf.mxu0
    %v644 = vadd.f32 0.0, %v643
    %645 = vmatmul.bf16.gmra.mxu0 %v417
    %v646 = vpop.f32.mrf.mxu0
    %v647 = vadd.f32 0.0, %v646
    %v648 = vpop.f32.mrf.mxu0
    %v649 = vadd.f32 0.0, %v648
    %650 = vmatmul.bf16.gmra.mxu0 %v418
    %v651 = vpop.f32.mrf.mxu0
    %v652 = vadd.f32 0.0, %v651
    %v653 = vpop.f32.mrf.mxu0
    %v654 = vadd.f32 0.0, %v653
    %655 = vmatmul.bf16.gmra.mxu0 %v419
    %v656 = vpop.f32.mrf.mxu0
    %v657 = vadd.f32 0.0, %v656
    %v658 = vpop.f32.mrf.mxu0
    %v659 = vadd.f32 0.0, %v658
    %660 = vmatmul.bf16.gmra.mxu0 %v420
    %v661 = vpop.f32.mrf.mxu0
    %v662 = vadd.f32 0.0, %v661
    %v663 = vpop.f32.mrf.mxu0
    %v664 = vadd.f32 0.0, %v663
    %665 = vmatmul.bf16.gmra.mxu0 %v421
    %v666 = vpop.f32.mrf.mxu0
    %v667 = vadd.f32 0.0, %v666
    %v668 = vpop.f32.mrf.mxu0
    %v669 = vadd.f32 0.0, %v668
    %670 = vdwg.mxu0
    %v671 = vadd.f32 %v118, %v512
    %v672 = vadd.f32 %v119, %v514
    %v673 = vadd.f32 %v120, %v517
    %v674 = vadd.f32 %v121, %v519
    %v675 = vadd.f32 %v122, %v522
    %v676 = vadd.f32 %v123, %v524
    %v677 = vadd.f32 %v124, %v527
    %v678 = vadd.f32 %v125, %v529
    %v679 = vadd.f32 %v126, %v532
    %v680 = vadd.f32 %v127, %v534
    %v681 = vadd.f32 %v128, %v537
    %v682 = vadd.f32 %v129, %v539
    %v683 = vadd.f32 %v130, %v542
    %v684 = vadd.f32 %v131, %v544
    %v685 = vadd.f32 %v132, %v547
    %v686 = vadd.f32 %v133, %v549
    %v687 = vadd.f32 %v134, %v552
    %v688 = vadd.f32 %v135, %v554
    %v689 = vadd.f32 %v136, %v557
    %v690 = vadd.f32 %v137, %v559
    %v691 = vadd.f32 %v138, %v562
    %v692 = vadd.f32 %v139, %v564
    %v693 = vadd.f32 %v140, %v567
    %v694 = vadd.f32 %v141, %v569
    %v695 = vadd.f32 %v142, %v572
    %v696 = vadd.f32 %v143, %v574
    %v697 = vadd.f32 %v144, %v577
    %v698 = vadd.f32 %v145, %v579
    %v699 = vadd.f32 %v146, %v582
    %v700 = vadd.f32 %v147, %v584
    %v701 = vadd.f32 %v148, %v587
    %v702 = vadd.f32 %v149, %v589
    %v703 = vadd.f32 %v150, %v592
    %v704 = vadd.f32 %v151, %v594
    %v705 = vadd.f32 %v152, %v597
    %v706 = vadd.f32 %v153, %v599
    %v707 = vadd.f32 %v154, %v602
    %v708 = vadd.f32 %v155, %v604
    %v709 = vadd.f32 %v156, %v607
    %v710 = vadd.f32 %v157, %v609
    %v711 = vadd.f32 %v158, %v612
    %v712 = vadd.f32 %v159, %v614
    %v713 = vadd.f32 %v160, %v617
    %v714 = vadd.f32 %v161, %v619
    %v715 = vadd.f32 %v162, %v622
    %v716 = vadd.f32 %v163, %v624
    %v717 = vadd.f32 %v164, %v627
    %v718 = vadd.f32 %v165, %v629
    %v719 = vadd.f32 %v166, %v632
    %v720 = vadd.f32 %v167, %v634
    %v721 = vadd.f32 %v168, %v637
    %v722 = vadd.f32 %v169, %v639
    %v723 = vadd.f32 %v170, %v642
    %v724 = vadd.f32 %v171, %v644
    %v725 = vadd.f32 %v172, %v647
    %v726 = vadd.f32 %v173, %v649
    %v727 = vadd.f32 %v174, %v652
    %v728 = vadd.f32 %v175, %v654
    %v729 = vadd.f32 %v176, %v657
    %v730 = vadd.f32 %v177, %v659
    %v731 = vadd.f32 %v178, %v662
    %v732 = vadd.f32 %v179, %v664
    %v733 = vadd.f32 %v180, %v667
    %v734 = vadd.f32 %v181, %v669
    %735 = vst [vmem:[#allocation2] sm:$0xff] %v671
    %736 = vst [vmem:[#allocation2 + $0x8] sm:$0xff] %v672
    %737 = vst [vmem:[#allocation2 + $0x10] sm:$0xff] %v673
    %738 = vst [vmem:[#allocation2 + $0x18] sm:$0xff] %v674
    %739 = vst [vmem:[#allocation2 + $0x20] sm:$0xff] %v675
    %740 = vst [vmem:[#allocation2 + $0x28] sm:$0xff] %v676
    %741 = vst [vmem:[#allocation2 + $0x30] sm:$0xff] %v677
    %742 = vst [vmem:[#allocation2 + $0x38] sm:$0xff] %v678
    %743 = vst [vmem:[#allocation2 + $0x40] sm:$0xff] %v679
    %744 = vst [vmem:[#allocation2 + $0x48] sm:$0xff] %v680
    %745 = vst [vmem:[#allocation2 + $0x50] sm:$0xff] %v681
    %746 = vst [vmem:[#allocation2 + $0x58] sm:$0xff] %v682
    %747 = vst [vmem:[#allocation2 + $0x60] sm:$0xff] %v683
    %748 = vst [vmem:[#allocation2 + $0x68] sm:$0xff] %v684
    %749 = vst [vmem:[#allocation2 + $0x70] sm:$0xff] %v685
    %750 = vst [vmem:[#allocation2 + $0x78] sm:$0xff] %v686
    %751 = vst [vmem:[#allocation2 + $0x80] sm:$0xff] %v687
    %752 = vst [vmem:[#allocation2 + $0x88] sm:$0xff] %v688
    %753 = vst [vmem:[#allocation2 + $0x90] sm:$0xff] %v689
    %754 = vst [vmem:[#allocation2 + $0x98] sm:$0xff] %v690
    %755 = vst [vmem:[#allocation2 + $0xa0] sm:$0xff] %v691
    %756 = vst [vmem:[#allocation2 + $0xa8] sm:$0xff] %v692
    %757 = vst [vmem:[#allocation2 + $0xb0] sm:$0xff] %v693
    %758 = vst [vmem:[#allocation2 + $0xb8] sm:$0xff] %v694
    %759 = vst [vmem:[#allocation2 + $0xc0] sm:$0xff] %v695
    %760 = vst [vmem:[#allocation2 + $0xc8] sm:$0xff] %v696
    %761 = vst [vmem:[#allocation2 + $0xd0] sm:$0xff] %v697
    %762 = vst [vmem:[#allocation2 + $0xd8] sm:$0xff] %v698
    %763 = vst [vmem:[#allocation2 + $0xe0] sm:$0xff] %v699
    %764 = vst [vmem:[#allocation2 + $0xe8] sm:$0xff] %v700
    %765 = vst [vmem:[#allocation2 + $0xf0] sm:$0xff] %v701
    %766 = vst [vmem:[#allocation2 + $0xf8] sm:$0xff] %v702
    %767 = vst [vmem:[#allocation2 + $0x100] sm:$0xff] %v703
    %768 = vst [vmem:[#allocation2 + $0x108] sm:$0xff] %v704
    %769 = vst [vmem:[#allocation2 + $0x110] sm:$0xff] %v705
    %770 = vst [vmem:[#allocation2 + $0x118] sm:$0xff] %v706
    %771 = vst [vmem:[#allocation2 + $0x120] sm:$0xff] %v707
    %772 = vst [vmem:[#allocation2 + $0x128] sm:$0xff] %v708
    %773 = vst [vmem:[#allocation2 + $0x130] sm:$0xff] %v709
    %774 = vst [vmem:[#allocation2 + $0x138] sm:$0xff] %v710
    %775 = vst [vmem:[#allocation2 + $0x140] sm:$0xff] %v711
    %776 = vst [vmem:[#allocation2 + $0x148] sm:$0xff] %v712
    %777 = vst [vmem:[#allocation2 + $0x150] sm:$0xff] %v713
    %778 = vst [vmem:[#allocation2 + $0x158] sm:$0xff] %v714
    %779 = vst [vmem:[#allocation2 + $0x160] sm:$0xff] %v715
    %780 = vst [vmem:[#allocation2 + $0x168] sm:$0xff] %v716
    %781 = vst [vmem:[#allocation2 + $0x170] sm:$0xff] %v717
    %782 = vst [vmem:[#allocation2 + $0x178] sm:$0xff] %v718
    %783 = vst [vmem:[#allocation2 + $0x180] sm:$0xff] %v719
    %784 = vst [vmem:[#allocation2 + $0x188] sm:$0xff] %v720
    %785 = vst [vmem:[#allocation2 + $0x190] sm:$0xff] %v721
    %786 = vst [vmem:[#allocation2 + $0x198] sm:$0xff] %v722
    %787 = vst [vmem:[#allocation2 + $0x1a0] sm:$0xff] %v723
    %788 = vst [vmem:[#allocation2 + $0x1a8] sm:$0xff] %v724
    %789 = vst [vmem:[#allocation2 + $0x1b0] sm:$0xff] %v725
    %790 = vst [vmem:[#allocation2 + $0x1b8] sm:$0xff] %v726
    %791 = vst [vmem:[#allocation2 + $0x1c0] sm:$0xff] %v727
    %792 = vst [vmem:[#allocation2 + $0x1c8] sm:$0xff] %v728
    %793 = vst [vmem:[#allocation2 + $0x1d0] sm:$0xff] %v729
    %794 = vst [vmem:[#allocation2 + $0x1d8] sm:$0xff] %v730
    %795 = vst [vmem:[#allocation2 + $0x1e0] sm:$0xff] %v731
    %796 = vst [vmem:[#allocation2 + $0x1e8] sm:$0xff] %v732
    %797 = vst [vmem:[#allocation2 + $0x1f0] sm:$0xff] %v733
    %798 = vst [vmem:[#allocation2 + $0x1f8] sm:$0xff] %v734
    // Predicated region
    $region30: #{tpu_custom_call.1} parent=1 // pred_check
      %p799 = pneg %p50
    $region31: #{tpu_custom_call.1} parent=1 // pred_check_branch
      %801 = sbr.rel (%p799) target = $region33
    $region32: #{tpu_custom_call.1} parent=1 // pred_region
      %v802 = vld [vmem:[#allocation2] sm:$0xff]
      %v803 = vld [vmem:[#allocation2 + $0x8] sm:$0xff]
      %v804 = vld [vmem:[#allocation2 + $0x10] sm:$0xff]
      %v805 = vld [vmem:[#allocation2 + $0x18] sm:$0xff]
      %v806 = vld [vmem:[#allocation2 + $0x20] sm:$0xff]
      %v807 = vld [vmem:[#allocation2 + $0x28] sm:$0xff]
      %v808 = vld [vmem:[#allocation2 + $0x30] sm:$0xff]
      %v809 = vld [vmem:[#allocation2 + $0x38] sm:$0xff]
      %v810 = vld [vmem:[#allocation2 + $0x40] sm:$0xff]
      %v811 = vld [vmem:[#allocation2 + $0x48] sm:$0xff]
      %v812 = vld [vmem:[#allocation2 + $0x50] sm:$0xff]
      %v813 = vld [vmem:[#allocation2 + $0x58] sm:$0xff]
      %v814 = vld [vmem:[#allocation2 + $0x60] sm:$0xff]
      %v815 = vld [vmem:[#allocation2 + $0x68] sm:$0xff]
      %v816 = vld [vmem:[#allocation2 + $0x70] sm:$0xff]
      %v817 = vld [vmem:[#allocation2 + $0x78] sm:$0xff]
      %v818 = vld [vmem:[#allocation2 + $0x80] sm:$0xff]
      %v819 = vld [vmem:[#allocation2 + $0x88] sm:$0xff]
      %v820 = vld [vmem:[#allocation2 + $0x90] sm:$0xff]
      %v821 = vld [vmem:[#allocation2 + $0x98] sm:$0xff]
      %v822 = vld [vmem:[#allocation2 + $0xa0] sm:$0xff]
      %v823 = vld [vmem:[#allocation2 + $0xa8] sm:$0xff]
      %v824 = vld [vmem:[#allocation2 + $0xb0] sm:$0xff]
      %v825 = vld [vmem:[#allocation2 + $0xb8] sm:$0xff]
      %v826 = vld [vmem:[#allocation2 + $0xc0] sm:$0xff]
      %v827 = vld [vmem:[#allocation2 + $0xc8] sm:$0xff]
      %v828 = vld [vmem:[#allocation2 + $0xd0] sm:$0xff]
      %v829 = vld [vmem:[#allocation2 + $0xd8] sm:$0xff]
      %v830 = vld [vmem:[#allocation2 + $0xe0] sm:$0xff]
      %v831 = vld [vmem:[#allocation2 + $0xe8] sm:$0xff]
      %v832 = vld [vmem:[#allocation2 + $0xf0] sm:$0xff]
      %v833 = vld [vmem:[#allocation2 + $0xf8] sm:$0xff]
      %v834 = vld [vmem:[#allocation2 + $0x100] sm:$0xff]
      %v835 = vld [vmem:[#allocation2 + $0x108] sm:$0xff]
      %v836 = vld [vmem:[#allocation2 + $0x110] sm:$0xff]
      %v837 = vld [vmem:[#allocation2 + $0x118] sm:$0xff]
      %v838 = vld [vmem:[#allocation2 + $0x120] sm:$0xff]
      %v839 = vld [vmem:[#allocation2 + $0x128] sm:$0xff]
      %v840 = vld [vmem:[#allocation2 + $0x130] sm:$0xff]
      %v841 = vld [vmem:[#allocation2 + $0x138] sm:$0xff]
      %v842 = vld [vmem:[#allocation2 + $0x140] sm:$0xff]
      %v843 = vld [vmem:[#allocation2 + $0x148] sm:$0xff]
      %v844 = vld [vmem:[#allocation2 + $0x150] sm:$0xff]
      %v845 = vld [vmem:[#allocation2 + $0x158] sm:$0xff]
      %v846 = vld [vmem:[#allocation2 + $0x160] sm:$0xff]
      %v847 = vld [vmem:[#allocation2 + $0x168] sm:$0xff]
      %v848 = vld [vmem:[#allocation2 + $0x170] sm:$0xff]
      %v849 = vld [vmem:[#allocation2 + $0x178] sm:$0xff]
      %v850 = vld [vmem:[#allocation2 + $0x180] sm:$0xff]
      %v851 = vld [vmem:[#allocation2 + $0x188] sm:$0xff]
      %v852 = vld [vmem:[#allocation2 + $0x190] sm:$0xff]
      %v853 = vld [vmem:[#allocation2 + $0x198] sm:$0xff]
      %v854 = vld [vmem:[#allocation2 + $0x1a0] sm:$0xff]
      %v855 = vld [vmem:[#allocation2 + $0x1a8] sm:$0xff]
      %v856 = vld [vmem:[#allocation2 + $0x1b0] sm:$0xff]
      %v857 = vld [vmem:[#allocation2 + $0x1b8] sm:$0xff]
      %v858 = vld [vmem:[#allocation2 + $0x1c0] sm:$0xff]
      %v859 = vld [vmem:[#allocation2 + $0x1c8] sm:$0xff]
      %v860 = vld [vmem:[#allocation2 + $0x1d0] sm:$0xff]
      %v861 = vld [vmem:[#allocation2 + $0x1d8] sm:$0xff]
      %v862 = vld [vmem:[#allocation2 + $0x1e0] sm:$0xff]
      %v863 = vld [vmem:[#allocation2 + $0x1e8] sm:$0xff]
      %v864 = vld [vmem:[#allocation2 + $0x1f0] sm:$0xff]
      %v865 = vld [vmem:[#allocation2 + $0x1f8] sm:$0xff]
      %v866 = vadd.f32 %v802, %v803
      %v867 = vadd.f32 %v866, %v804
      %v868 = vadd.f32 %v867, %v805
      %v869 = vadd.f32 %v868, %v806
      %v870 = vadd.f32 %v869, %v807
      %v871 = vadd.f32 %v870, %v808
      %v872 = vadd.f32 %v871, %v809
      %v873 = vadd.f32 %v872, %v810
      %v874 = vadd.f32 %v873, %v811
      %v875 = vadd.f32 %v874, %v812
      %v876 = vadd.f32 %v875, %v813
      %v877 = vadd.f32 %v876, %v814
      %v878 = vadd.f32 %v877, %v815
      %v879 = vadd.f32 %v878, %v816
      %v880 = vadd.f32 %v879, %v817
      %v881 = vadd.f32 %v880, %v818
      %v882 = vadd.f32 %v881, %v819
      %v883 = vadd.f32 %v882, %v820
      %v884 = vadd.f32 %v883, %v821
      %v885 = vadd.f32 %v884, %v822
      %v886 = vadd.f32 %v885, %v823
      %v887 = vadd.f32 %v886, %v824
      %v888 = vadd.f32 %v887, %v825
      %v889 = vadd.f32 %v888, %v826
      %v890 = vadd.f32 %v889, %v827
      %v891 = vadd.f32 %v890, %v828
      %v892 = vadd.f32 %v891, %v829
      %v893 = vadd.f32 %v892, %v830
      %v894 = vadd.f32 %v893, %v831
      %v895 = vadd.f32 %v894, %v832
      %v896 = vadd.f32 %v895, %v833
      %v897 = vadd.f32 %v896, %v834
      %v898 = vadd.f32 %v897, %v835
      %v899 = vadd.f32 %v898, %v836
      %v900 = vadd.f32 %v899, %v837
      %v901 = vadd.f32 %v900, %v838
      %v902 = vadd.f32 %v901, %v839
      %v903 = vadd.f32 %v902, %v840
      %v904 = vadd.f32 %v903, %v841
      %v905 = vadd.f32 %v904, %v842
      %v906 = vadd.f32 %v905, %v843
      %v907 = vadd.f32 %v906, %v844
      %v908 = vadd.f32 %v907, %v845
      %v909 = vadd.f32 %v908, %v846
      %v910 = vadd.f32 %v909, %v847
      %v911 = vadd.f32 %v910, %v848
      %v912 = vadd.f32 %v911, %v849
      %v913 = vadd.f32 %v912, %v850
      %v914 = vadd.f32 %v913, %v851
      %v915 = vadd.f32 %v914, %v852
      %v916 = vadd.f32 %v915, %v853
      %v917 = vadd.f32 %v916, %v854
      %v918 = vadd.f32 %v917, %v855
      %v919 = vadd.f32 %v918, %v856
      %v920 = vadd.f32 %v919, %v857
      %v921 = vadd.f32 %v920, %v858
      %v922 = vadd.f32 %v921, %v859
      %v923 = vadd.f32 %v922, %v860
      %v924 = vadd.f32 %v923, %v861
      %v925 = vadd.f32 %v924, %v862
      %v926 = vadd.f32 %v925, %v863
      %v927 = vadd.f32 %v926, %v864
      %v928 = vadd.f32 %v927, %v865
      %v929 = vrot.slane %v928, 4
      %v930 = vadd.f32 %v928, %v929
      %v931 = vrot.slane %v930, 2
      %v932 = vadd.f32 %v930, %v931
      %v933 = vrot.slane %v932, 1
      %v934 = vadd.f32 %v932, %v933
      %v935 = vmul.f32 %v934, 0.001953125
      %v936 = vsub.f32 %v802, %v935
      %v937 = vsub.f32 %v803, %v935
      %v938 = vsub.f32 %v804, %v935
      %v939 = vsub.f32 %v805, %v935
      %v940 = vsub.f32 %v806, %v935
      %v941 = vsub.f32 %v807, %v935
      %v942 = vsub.f32 %v808, %v935
      %v943 = vsub.f32 %v809, %v935
      %v944 = vsub.f32 %v810, %v935
      %v945 = vsub.f32 %v811, %v935
      %v946 = vsub.f32 %v812, %v935
      %v947 = vsub.f32 %v813, %v935
      %v948 = vsub.f32 %v814, %v935
      %v949 = vsub.f32 %v815, %v935
      %v950 = vsub.f32 %v816, %v935
      %v951 = vsub.f32 %v817, %v935
      %v952 = vsub.f32 %v818, %v935
      %v953 = vsub.f32 %v819, %v935
      %v954 = vsub.f32 %v820, %v935
      %v955 = vsub.f32 %v821, %v935
      %v956 = vsub.f32 %v822, %v935
      %v957 = vsub.f32 %v823, %v935
      %v958 = vsub.f32 %v824, %v935
      %v959 = vsub.f32 %v825, %v935
      %v960 = vsub.f32 %v826, %v935
      %v961 = vsub.f32 %v827, %v935
      %v962 = vsub.f32 %v828, %v935
      %v963 = vsub.f32 %v829, %v935
      %v964 = vsub.f32 %v830, %v935
      %v965 = vsub.f32 %v831, %v935
      %v966 = vsub.f32 %v832, %v935
      %v967 = vsub.f32 %v833, %v935
      %v968 = vsub.f32 %v834, %v935
      %v969 = vsub.f32 %v835, %v935
      %v970 = vsub.f32 %v836, %v935
      %v971 = vsub.f32 %v837, %v935
      %v972 = vsub.f32 %v838, %v935
      %v973 = vsub.f32 %v839, %v935
      %v974 = vsub.f32 %v840, %v935
      %v975 = vsub.f32 %v841, %v935
      %v976 = vsub.f32 %v842, %v935
      %v977 = vsub.f32 %v843, %v935
      %v978 = vsub.f32 %v844, %v935
      %v979 = vsub.f32 %v845, %v935
      %v980 = vsub.f32 %v846, %v935
      %v981 = vsub.f32 %v847, %v935
      %v982 = vsub.f32 %v848, %v935
      %v983 = vsub.f32 %v849, %v935
      %v984 = vsub.f32 %v850, %v935
      %v985 = vsub.f32 %v851, %v935
      %v986 = vsub.f32 %v852, %v935
      %v987 = vsub.f32 %v853, %v935
      %v988 = vsub.f32 %v854, %v935
      %v989 = vsub.f32 %v855, %v935
      %v990 = vsub.f32 %v856, %v935
      %v991 = vsub.f32 %v857, %v935
      %v992 = vsub.f32 %v858, %v935
      %v993 = vsub.f32 %v859, %v935
      %v994 = vsub.f32 %v860, %v935
      %v995 = vsub.f32 %v861, %v935
      %v996 = vsub.f32 %v862, %v935
      %v997 = vsub.f32 %v863, %v935
      %v998 = vsub.f32 %v864, %v935
      %v999 = vsub.f32 %v865, %v935
      %v1000 = vmul.f32 %v936, %v936
      %v1001 = vmul.f32 %v937, %v937
      %v1002 = vmul.f32 %v938, %v938
      %v1003 = vmul.f32 %v939, %v939
      %v1004 = vmul.f32 %v940, %v940
      %v1005 = vmul.f32 %v941, %v941
      %v1006 = vmul.f32 %v942, %v942
      %v1007 = vmul.f32 %v943, %v943
      %v1008 = vmul.f32 %v944, %v944
      %v1009 = vmul.f32 %v945, %v945
      %v1010 = vmul.f32 %v946, %v946
      %v1011 = vmul.f32 %v947, %v947
      %v1012 = vmul.f32 %v948, %v948
      %v1013 = vmul.f32 %v949, %v949
      %v1014 = vmul.f32 %v950, %v950
      %v1015 = vmul.f32 %v951, %v951
      %v1016 = vmul.f32 %v952, %v952
      %v1017 = vmul.f32 %v953, %v953
      %v1018 = vmul.f32 %v954, %v954
      %v1019 = vmul.f32 %v955, %v955
      %v1020 = vmul.f32 %v956, %v956
      %v1021 = vmul.f32 %v957, %v957
      %v1022 = vmul.f32 %v958, %v958
      %v1023 = vmul.f32 %v959, %v959
      %v1024 = vmul.f32 %v960, %v960
      %v1025 = vmul.f32 %v961, %v961
      %v1026 = vmul.f32 %v962, %v962
      %v1027 = vmul.f32 %v963, %v963
      %v1028 = vmul.f32 %v964, %v964
      %v1029 = vmul.f32 %v965, %v965
      %v1030 = vmul.f32 %v966, %v966
      %v1031 = vmul.f32 %v967, %v967
      %v1032 = vmul.f32 %v968, %v968
      %v1033 = vmul.f32 %v969, %v969
      %v1034 = vmul.f32 %v970, %v970
      %v1035 = vmul.f32 %v971, %v971
      %v1036 = vmul.f32 %v972, %v972
      %v1037 = vmul.f32 %v973, %v973
      %v1038 = vmul.f32 %v974, %v974
      %v1039 = vmul.f32 %v975, %v975
      %v1040 = vmul.f32 %v976, %v976
      %v1041 = vmul.f32 %v977, %v977
      %v1042 = vmul.f32 %v978, %v978
      %v1043 = vmul.f32 %v979, %v979
      %v1044 = vmul.f32 %v980, %v980
      %v1045 = vmul.f32 %v981, %v981
      %v1046 = vmul.f32 %v982, %v982
      %v1047 = vmul.f32 %v983, %v983
      %v1048 = vmul.f32 %v984, %v984
      %v1049 = vmul.f32 %v985, %v985
      %v1050 = vmul.f32 %v986, %v986
      %v1051 = vmul.f32 %v987, %v987
      %v1052 = vmul.f32 %v988, %v988
      %v1053 = vmul.f32 %v989, %v989
      %v1054 = vmul.f32 %v990, %v990
      %v1055 = vmul.f32 %v991, %v991
      %v1056 = vmul.f32 %v992, %v992
      %v1057 = vmul.f32 %v993, %v993
      %v1058 = vmul.f32 %v994, %v994
      %v1059 = vmul.f32 %v995, %v995
      %v1060 = vmul.f32 %v996, %v996
      %v1061 = vmul.f32 %v997, %v997
      %v1062 = vmul.f32 %v998, %v998
      %v1063 = vmul.f32 %v999, %v999
      %v1064 = vadd.f32 %v1000, %v1001
      %v1065 = vadd.f32 %v1064, %v1002
      %v1066 = vadd.f32 %v1065, %v1003
      %v1067 = vadd.f32 %v1066, %v1004
      %v1068 = vadd.f32 %v1067, %v1005
      %v1069 = vadd.f32 %v1068, %v1006
      %v1070 = vadd.f32 %v1069, %v1007
      %v1071 = vadd.f32 %v1070, %v1008
      %v1072 = vadd.f32 %v1071, %v1009
      %v1073 = vadd.f32 %v1072, %v1010
      %v1074 = vadd.f32 %v1073, %v1011
      %v1075 = vadd.f32 %v1074, %v1012
      %v1076 = vadd.f32 %v1075, %v1013
      %v1077 = vadd.f32 %v1076, %v1014
      %v1078 = vadd.f32 %v1077, %v1015
      %v1079 = vadd.f32 %v1078, %v1016
      %v1080 = vadd.f32 %v1079, %v1017
      %v1081 = vadd.f32 %v1080, %v1018
      %v1082 = vadd.f32 %v1081, %v1019
      %v1083 = vadd.f32 %v1082, %v1020
      %v1084 = vadd.f32 %v1083, %v1021
      %v1085 = vadd.f32 %v1084, %v1022
      %v1086 = vadd.f32 %v1085, %v1023
      %v1087 = vadd.f32 %v1086, %v1024
      %v1088 = vadd.f32 %v1087, %v1025
      %v1089 = vadd.f32 %v1088, %v1026
      %v1090 = vadd.f32 %v1089, %v1027
      %v1091 = vadd.f32 %v1090, %v1028
      %v1092 = vadd.f32 %v1091, %v1029
      %v1093 = vadd.f32 %v1092, %v1030
      %v1094 = vadd.f32 %v1093, %v1031
      %v1095 = vadd.f32 %v1094, %v1032
      %v1096 = vadd.f32 %v1095, %v1033
      %v1097 = vadd.f32 %v1096, %v1034
      %v1098 = vadd.f32 %v1097, %v1035
      %v1099 = vadd.f32 %v1098, %v1036
      %v1100 = vadd.f32 %v1099, %v1037
      %v1101 = vadd.f32 %v1100, %v1038
      %v1102 = vadd.f32 %v1101, %v1039
      %v1103 = vadd.f32 %v1102, %v1040
      %v1104 = vadd.f32 %v1103, %v1041
      %v1105 = vadd.f32 %v1104, %v1042
      %v1106 = vadd.f32 %v1105, %v1043
      %v1107 = vadd.f32 %v1106, %v1044
      %v1108 = vadd.f32 %v1107, %v1045
      %v1109 = vadd.f32 %v1108, %v1046
      %v1110 = vadd.f32 %v1109, %v1047
      %v1111 = vadd.f32 %v1110, %v1048
      %v1112 = vadd.f32 %v1111, %v1049
      %v1113 = vadd.f32 %v1112, %v1050
      %v1114 = vadd.f32 %v1113, %v1051
      %v1115 = vadd.f32 %v1114, %v1052
      %v1116 = vadd.f32 %v1115, %v1053
      %v1117 = vadd.f32 %v1116, %v1054
      %v1118 = vadd.f32 %v1117, %v1055
      %v1119 = vadd.f32 %v1118, %v1056
      %v1120 = vadd.f32 %v1119, %v1057
      %v1121 = vadd.f32 %v1120, %v1058
      %v1122 = vadd.f32 %v1121, %v1059
      %v1123 = vadd.f32 %v1122, %v1060
      %v1124 = vadd.f32 %v1123, %v1061
      %v1125 = vadd.f32 %v1124, %v1062
      %v1126 = vadd.f32 %v1125, %v1063
      %v1127 = vrot.slane %v1126, 4
      %v1128 = vadd.f32 %v1126, %v1127
      %v1129 = vrot.slane %v1128, 2
      %v1130 = vadd.f32 %v1128, %v1129
      %v1131 = vrot.slane %v1130, 1
      %v1132 = vadd.f32 %v1130, %v1131
      %v1133 = vmul.f32 %v1132, 0.001953125
      %v1134 = vadd.f32 %v1133, 1e-05
      %v1135 = vrsqrt.pop %v1134
      %v1136 = vmul.f32 %v1135, %v1134
      %v1137 = vmul.f32 %v1136, %v1135
      %v1138 = vmul.f32 0.5, %v1137
      %v1139 = vsub.f32 1.5, %v1138
      %v1140 = vmul.f32 %v1135, %v1139
      %vm1141 = vweird.f32 %v1134
      %vm1142 = vweird.f32 %v1135
      %vm1143 = vmor %vm1141, %vm1142
      %v1144 = vsel %vm1143, %v1135, %v1140
      %v1145 = vmul.f32 %v936, %v1144
      %v1146 = vmul.f32 %v937, %v1144
      %v1147 = vmul.f32 %v938, %v1144
      %v1148 = vmul.f32 %v939, %v1144
      %v1149 = vmul.f32 %v940, %v1144
      %v1150 = vmul.f32 %v941, %v1144
      %v1151 = vmul.f32 %v942, %v1144
      %v1152 = vmul.f32 %v943, %v1144
      %v1153 = vmul.f32 %v944, %v1144
      %v1154 = vmul.f32 %v945, %v1144
      %v1155 = vmul.f32 %v946, %v1144
      %v1156 = vmul.f32 %v947, %v1144
      %v1157 = vmul.f32 %v948, %v1144
      %v1158 = vmul.f32 %v949, %v1144
      %v1159 = vmul.f32 %v950, %v1144
      %v1160 = vmul.f32 %v951, %v1144
      %v1161 = vmul.f32 %v952, %v1144
      %v1162 = vmul.f32 %v953, %v1144
      %v1163 = vmul.f32 %v954, %v1144
      %v1164 = vmul.f32 %v955, %v1144
      %v1165 = vmul.f32 %v956, %v1144
      %v1166 = vmul.f32 %v957, %v1144
      %v1167 = vmul.f32 %v958, %v1144
      %v1168 = vmul.f32 %v959, %v1144
      %v1169 = vmul.f32 %v960, %v1144
      %v1170 = vmul.f32 %v961, %v1144
      %v1171 = vmul.f32 %v962, %v1144
      %v1172 = vmul.f32 %v963, %v1144
      %v1173 = vmul.f32 %v964, %v1144
      %v1174 = vmul.f32 %v965, %v1144
      %v1175 = vmul.f32 %v966, %v1144
      %v1176 = vmul.f32 %v967, %v1144
      %v1177 = vmul.f32 %v968, %v1144
      %v1178 = vmul.f32 %v969, %v1144
      %v1179 = vmul.f32 %v970, %v1144
      %v1180 = vmul.f32 %v971, %v1144
      %v1181 = vmul.f32 %v972, %v1144
      %v1182 = vmul.f32 %v973, %v1144
      %v1183 = vmul.f32 %v974, %v1144
      %v1184 = vmul.f32 %v975, %v1144
      %v1185 = vmul.f32 %v976, %v1144
      %v1186 = vmul.f32 %v977, %v1144
      %v1187 = vmul.f32 %v978, %v1144
      %v1188 = vmul.f32 %v979, %v1144
      %v1189 = vmul.f32 %v980, %v1144
      %v1190 = vmul.f32 %v981, %v1144
      %v1191 = vmul.f32 %v982, %v1144
      %v1192 = vmul.f32 %v983, %v1144
      %v1193 = vmul.f32 %v984, %v1144
      %v1194 = vmul.f32 %v985, %v1144
      %v1195 = vmul.f32 %v986, %v1144
      %v1196 = vmul.f32 %v987, %v1144
      %v1197 = vmul.f32 %v988, %v1144
      %v1198 = vmul.f32 %v989, %v1144
      %v1199 = vmul.f32 %v990, %v1144
      %v1200 = vmul.f32 %v991, %v1144
      %v1201 = vmul.f32 %v992, %v1144
      %v1202 = vmul.f32 %v993, %v1144
      %v1203 = vmul.f32 %v994, %v1144
      %v1204 = vmul.f32 %v995, %v1144
      %v1205 = vmul.f32 %v996, %v1144
      %v1206 = vmul.f32 %v997, %v1144
      %v1207 = vmul.f32 %v998, %v1144
      %v1208 = vmul.f32 %v999, %v1144
      %v1209 = vld [vmem:[%s2] sm:$0x1]
      %v1211 = vperm.slane %v1209, 0
      %v1213 = vmul.f32 %v1145, %v1211
      %v1214 = vmul.f32 %v1146, %v1211
      %v1215 = vmul.f32 %v1147, %v1211
      %v1216 = vmul.f32 %v1148, %v1211
      %v1217 = vmul.f32 %v1149, %v1211
      %v1218 = vmul.f32 %v1150, %v1211
      %v1219 = vmul.f32 %v1151, %v1211
      %v1220 = vmul.f32 %v1152, %v1211
      %v1221 = vmul.f32 %v1153, %v1211
      %v1222 = vmul.f32 %v1154, %v1211
      %v1223 = vmul.f32 %v1155, %v1211
      %v1224 = vmul.f32 %v1156, %v1211
      %v1225 = vmul.f32 %v1157, %v1211
      %v1226 = vmul.f32 %v1158, %v1211
      %v1227 = vmul.f32 %v1159, %v1211
      %v1228 = vmul.f32 %v1160, %v1211
      %v1229 = vmul.f32 %v1161, %v1211
      %v1230 = vmul.f32 %v1162, %v1211
      %v1231 = vmul.f32 %v1163, %v1211
      %v1232 = vmul.f32 %v1164, %v1211
      %v1233 = vmul.f32 %v1165, %v1211
      %v1234 = vmul.f32 %v1166, %v1211
      %v1235 = vmul.f32 %v1167, %v1211
      %v1236 = vmul.f32 %v1168, %v1211
      %v1237 = vmul.f32 %v1169, %v1211
      %v1238 = vmul.f32 %v1170, %v1211
      %v1239 = vmul.f32 %v1171, %v1211
      %v1240 = vmul.f32 %v1172, %v1211
      %v1241 = vmul.f32 %v1173, %v1211
      %v1242 = vmul.f32 %v1174, %v1211
      %v1243 = vmul.f32 %v1175, %v1211
      %v1244 = vmul.f32 %v1176, %v1211
      %v1245 = vmul.f32 %v1177, %v1211
      %v1246 = vmul.f32 %v1178, %v1211
      %v1247 = vmul.f32 %v1179, %v1211
      %v1248 = vmul.f32 %v1180, %v1211
      %v1249 = vmul.f32 %v1181, %v1211
      %v1250 = vmul.f32 %v1182, %v1211
      %v1251 = vmul.f32 %v1183, %v1211
      %v1252 = vmul.f32 %v1184, %v1211
      %v1253 = vmul.f32 %v1185, %v1211
      %v1254 = vmul.f32 %v1186, %v1211
      %v1255 = vmul.f32 %v1187, %v1211
      %v1256 = vmul.f32 %v1188, %v1211
      %v1257 = vmul.f32 %v1189, %v1211
      %v1258 = vmul.f32 %v1190, %v1211
      %v1259 = vmul.f32 %v1191, %v1211
      %v1260 = vmul.f32 %v1192, %v1211
      %v1261 = vmul.f32 %v1193, %v1211
      %v1262 = vmul.f32 %v1194, %v1211
      %v1263 = vmul.f32 %v1195, %v1211
      %v1264 = vmul.f32 %v1196, %v1211
      %v1265 = vmul.f32 %v1197, %v1211
      %v1266 = vmul.f32 %v1198, %v1211
      %v1267 = vmul.f32 %v1199, %v1211
      %v1268 = vmul.f32 %v1200, %v1211
      %v1269 = vmul.f32 %v1201, %v1211
      %v1270 = vmul.f32 %v1202, %v1211
      %v1271 = vmul.f32 %v1203, %v1211
      %v1272 = vmul.f32 %v1204, %v1211
      %v1273 = vmul.f32 %v1205, %v1211
      %v1274 = vmul.f32 %v1206, %v1211
      %v1275 = vmul.f32 %v1207, %v1211
      %v1276 = vmul.f32 %v1208, %v1211
      %v1277 = vld [vmem:[%s3] sm:$0x1]
      %v1279 = vperm.slane %v1277, 0
      %v1281 = vadd.f32 %v1213, %v1279
      %v1282 = vadd.f32 %v1214, %v1279
      %v1283 = vadd.f32 %v1215, %v1279
      %v1284 = vadd.f32 %v1216, %v1279
      %v1285 = vadd.f32 %v1217, %v1279
      %v1286 = vadd.f32 %v1218, %v1279
      %v1287 = vadd.f32 %v1219, %v1279
      %v1288 = vadd.f32 %v1220, %v1279
      %v1289 = vadd.f32 %v1221, %v1279
      %v1290 = vadd.f32 %v1222, %v1279
      %v1291 = vadd.f32 %v1223, %v1279
      %v1292 = vadd.f32 %v1224, %v1279
      %v1293 = vadd.f32 %v1225, %v1279
      %v1294 = vadd.f32 %v1226, %v1279
      %v1295 = vadd.f32 %v1227, %v1279
      %v1296 = vadd.f32 %v1228, %v1279
      %v1297 = vadd.f32 %v1229, %v1279
      %v1298 = vadd.f32 %v1230, %v1279
      %v1299 = vadd.f32 %v1231, %v1279
      %v1300 = vadd.f32 %v1232, %v1279
      %v1301 = vadd.f32 %v1233, %v1279
      %v1302 = vadd.f32 %v1234, %v1279
      %v1303 = vadd.f32 %v1235, %v1279
      %v1304 = vadd.f32 %v1236, %v1279
      %v1305 = vadd.f32 %v1237, %v1279
      %v1306 = vadd.f32 %v1238, %v1279
      %v1307 = vadd.f32 %v1239, %v1279
      %v1308 = vadd.f32 %v1240, %v1279
      %v1309 = vadd.f32 %v1241, %v1279
      %v1310 = vadd.f32 %v1242, %v1279
      %v1311 = vadd.f32 %v1243, %v1279
      %v1312 = vadd.f32 %v1244, %v1279
      %v1313 = vadd.f32 %v1245, %v1279
      %v1314 = vadd.f32 %v1246, %v1279
      %v1315 = vadd.f32 %v1247, %v1279
      %v1316 = vadd.f32 %v1248, %v1279
      %v1317 = vadd.f32 %v1249, %v1279
      %v1318 = vadd.f32 %v1250, %v1279
      %v1319 = vadd.f32 %v1251, %v1279
      %v1320 = vadd.f32 %v1252, %v1279
      %v1321 = vadd.f32 %v1253, %v1279
      %v1322 = vadd.f32 %v1254, %v1279
      %v1323 = vadd.f32 %v1255, %v1279
      %v1324 = vadd.f32 %v1256, %v1279
      %v1325 = vadd.f32 %v1257, %v1279
      %v1326 = vadd.f32 %v1258, %v1279
      %v1327 = vadd.f32 %v1259, %v1279
      %v1328 = vadd.f32 %v1260, %v1279
      %v1329 = vadd.f32 %v1261, %v1279
      %v1330 = vadd.f32 %v1262, %v1279
      %v1331 = vadd.f32 %v1263, %v1279
      %v1332 = vadd.f32 %v1264, %v1279
      %v1333 = vadd.f32 %v1265, %v1279
      %v1334 = vadd.f32 %v1266, %v1279
      %v1335 = vadd.f32 %v1267, %v1279
      %v1336 = vadd.f32 %v1268, %v1279
      %v1337 = vadd.f32 %v1269, %v1279
      %v1338 = vadd.f32 %v1270, %v1279
      %v1339 = vadd.f32 %v1271, %v1279
      %v1340 = vadd.f32 %v1272, %v1279
      %v1341 = vadd.f32 %v1273, %v1279
      %v1342 = vadd.f32 %v1274, %v1279
      %v1343 = vadd.f32 %v1275, %v1279
      %v1344 = vadd.f32 %v1276, %v1279
      %v1345 = vmax.f32 %v1281, 0.0
      %v1346 = vmax.f32 %v1282, 0.0
      %v1347 = vmax.f32 %v1283, 0.0
      %v1348 = vmax.f32 %v1284, 0.0
      %v1349 = vmax.f32 %v1285, 0.0
      %v1350 = vmax.f32 %v1286, 0.0
      %v1351 = vmax.f32 %v1287, 0.0
      %v1352 = vmax.f32 %v1288, 0.0
      %v1353 = vmax.f32 %v1289, 0.0
      %v1354 = vmax.f32 %v1290, 0.0
      %v1355 = vmax.f32 %v1291, 0.0
      %v1356 = vmax.f32 %v1292, 0.0
      %v1357 = vmax.f32 %v1293, 0.0
      %v1358 = vmax.f32 %v1294, 0.0
      %v1359 = vmax.f32 %v1295, 0.0
      %v1360 = vmax.f32 %v1296, 0.0
      %v1361 = vmax.f32 %v1297, 0.0
      %v1362 = vmax.f32 %v1298, 0.0
      %v1363 = vmax.f32 %v1299, 0.0
      %v1364 = vmax.f32 %v1300, 0.0
      %v1365 = vmax.f32 %v1301, 0.0
      %v1366 = vmax.f32 %v1302, 0.0
      %v1367 = vmax.f32 %v1303, 0.0
      %v1368 = vmax.f32 %v1304, 0.0
      %v1369 = vmax.f32 %v1305, 0.0
      %v1370 = vmax.f32 %v1306, 0.0
      %v1371 = vmax.f32 %v1307, 0.0
      %v1372 = vmax.f32 %v1308, 0.0
      %v1373 = vmax.f32 %v1309, 0.0
      %v1374 = vmax.f32 %v1310, 0.0
      %v1375 = vmax.f32 %v1311, 0.0
      %v1376 = vmax.f32 %v1312, 0.0
      %v1377 = vmax.f32 %v1313, 0.0
      %v1378 = vmax.f32 %v1314, 0.0
      %v1379 = vmax.f32 %v1315, 0.0
      %v1380 = vmax.f32 %v1316, 0.0
      %v1381 = vmax.f32 %v1317, 0.0
      %v1382 = vmax.f32 %v1318, 0.0
      %v1383 = vmax.f32 %v1319, 0.0
      %v1384 = vmax.f32 %v1320, 0.0
      %v1385 = vmax.f32 %v1321, 0.0
      %v1386 = vmax.f32 %v1322, 0.0
      %v1387 = vmax.f32 %v1323, 0.0
      %v1388 = vmax.f32 %v1324, 0.0
      %v1389 = vmax.f32 %v1325, 0.0
      %v1390 = vmax.f32 %v1326, 0.0
      %v1391 = vmax.f32 %v1327, 0.0
      %v1392 = vmax.f32 %v1328, 0.0
      %v1393 = vmax.f32 %v1329, 0.0
      %v1394 = vmax.f32 %v1330, 0.0
      %v1395 = vmax.f32 %v1331, 0.0
      %v1396 = vmax.f32 %v1332, 0.0
      %v1397 = vmax.f32 %v1333, 0.0
      %v1398 = vmax.f32 %v1334, 0.0
      %v1399 = vmax.f32 %v1335, 0.0
      %v1400 = vmax.f32 %v1336, 0.0
      %v1401 = vmax.f32 %v1337, 0.0
      %v1402 = vmax.f32 %v1338, 0.0
      %v1403 = vmax.f32 %v1339, 0.0
      %v1404 = vmax.f32 %v1340, 0.0
      %v1405 = vmax.f32 %v1341, 0.0
      %v1406 = vmax.f32 %v1342, 0.0
      %v1407 = vmax.f32 %v1343, 0.0
      %v1408 = vmax.f32 %v1344, 0.0
      %v1409 = vpack.c.bf16 %v1345, %v1345
      %v1410 = vpack.c.bf16 %v1346, %v1346
      %v1411 = vpack.c.bf16 %v1347, %v1347
      %v1412 = vpack.c.bf16 %v1348, %v1348
      %v1413 = vpack.c.bf16 %v1349, %v1349
      %v1414 = vpack.c.bf16 %v1350, %v1350
      %v1415 = vpack.c.bf16 %v1351, %v1351
      %v1416 = vpack.c.bf16 %v1352, %v1352
      %v1417 = vpack.c.bf16 %v1353, %v1353
      %v1418 = vpack.c.bf16 %v1354, %v1354
      %v1419 = vpack.c.bf16 %v1355, %v1355
      %v1420 = vpack.c.bf16 %v1356, %v1356
      %v1421 = vpack.c.bf16 %v1357, %v1357
      %v1422 = vpack.c.bf16 %v1358, %v1358
      %v1423 = vpack.c.bf16 %v1359, %v1359
      %v1424 = vpack.c.bf16 %v1360, %v1360
      %v1425 = vpack.c.bf16 %v1361, %v1361
      %v1426 = vpack.c.bf16 %v1362, %v1362
      %v1427 = vpack.c.bf16 %v1363, %v1363
      %v1428 = vpack.c.bf16 %v1364, %v1364
      %v1429 = vpack.c.bf16 %v1365, %v1365
      %v1430 = vpack.c.bf16 %v1366, %v1366
      %v1431 = vpack.c.bf16 %v1367, %v1367
      %v1432 = vpack.c.bf16 %v1368, %v1368
      %v1433 = vpack.c.bf16 %v1369, %v1369
      %v1434 = vpack.c.bf16 %v1370, %v1370
      %v1435 = vpack.c.bf16 %v1371, %v1371
      %v1436 = vpack.c.bf16 %v1372, %v1372
      %v1437 = vpack.c.bf16 %v1373, %v1373
      %v1438 = vpack.c.bf16 %v1374, %v1374
      %v1439 = vpack.c.bf16 %v1375, %v1375
      %v1440 = vpack.c.bf16 %v1376, %v1376
      %v1441 = vpack.c.bf16 %v1377, %v1377
      %v1442 = vpack.c.bf16 %v1378, %v1378
      %v1443 = vpack.c.bf16 %v1379, %v1379
      %v1444 = vpack.c.bf16 %v1380, %v1380
      %v1445 = vpack.c.bf16 %v1381, %v1381
      %v1446 = vpack.c.bf16 %v1382, %v1382
      %v1447 = vpack.c.bf16 %v1383, %v1383
      %v1448 = vpack.c.bf16 %v1384, %v1384
      %v1449 = vpack.c.bf16 %v1385, %v1385
      %v1450 = vpack.c.bf16 %v1386, %v1386
      %v1451 = vpack.c.bf16 %v1387, %v1387
      %v1452 = vpack.c.bf16 %v1388, %v1388
      %v1453 = vpack.c.bf16 %v1389, %v1389
      %v1454 = vpack.c.bf16 %v1390, %v1390
      %v1455 = vpack.c.bf16 %v1391, %v1391
      %v1456 = vpack.c.bf16 %v1392, %v1392
      %v1457 = vpack.c.bf16 %v1393, %v1393
      %v1458 = vpack.c.bf16 %v1394, %v1394
      %v1459 = vpack.c.bf16 %v1395, %v1395
      %v1460 = vpack.c.bf16 %v1396, %v1396
      %v1461 = vpack.c.bf16 %v1397, %v1397
      %v1462 = vpack.c.bf16 %v1398, %v1398
      %v1463 = vpack.c.bf16 %v1399, %v1399
      %v1464 = vpack.c.bf16 %v1400, %v1400
      %v1465 = vpack.c.bf16 %v1401, %v1401
      %v1466 = vpack.c.bf16 %v1402, %v1402
      %v1467 = vpack.c.bf16 %v1403, %v1403
      %v1468 = vpack.c.bf16 %v1404, %v1404
      %v1469 = vpack.c.bf16 %v1405, %v1405
      %v1470 = vpack.c.bf16 %v1406, %v1406
      %v1471 = vpack.c.bf16 %v1407, %v1407
      %v1472 = vpack.c.bf16 %v1408, %v1408
      %1473 = vst [vmem:[#allocation8] sm:$0xf] %v1409
      %1474 = vst [vmem:[#allocation8 + $0x4] sm:$0xf] %v1410
      %1475 = vst [vmem:[#allocation8 + $0x8] sm:$0xf] %v1411
      %1476 = vst [vmem:[#allocation8 + $0xc] sm:$0xf] %v1412
      %1477 = vst [vmem:[#allocation8 + $0x10] sm:$0xf] %v1413
      %1478 = vst [vmem:[#allocation8 + $0x14] sm:$0xf] %v1414
      %1479 = vst [vmem:[#allocation8 + $0x18] sm:$0xf] %v1415
      %1480 = vst [vmem:[#allocation8 + $0x1c] sm:$0xf] %v1416
      %1481 = vst [vmem:[#allocation8 + $0x20] sm:$0xf] %v1417
      %1482 = vst [vmem:[#allocation8 + $0x24] sm:$0xf] %v1418
      %1483 = vst [vmem:[#allocation8 + $0x28] sm:$0xf] %v1419
      %1484 = vst [vmem:[#allocation8 + $0x2c] sm:$0xf] %v1420
      %1485 = vst [vmem:[#allocation8 + $0x30] sm:$0xf] %v1421
      %1486 = vst [vmem:[#allocation8 + $0x34] sm:$0xf] %v1422
      %1487 = vst [vmem:[#allocation8 + $0x38] sm:$0xf] %v1423
      %1488 = vst [vmem:[#allocation8 + $0x3c] sm:$0xf] %v1424
      %1489 = vst [vmem:[#allocation8 + $0x40] sm:$0xf] %v1425
      %1490 = vst [vmem:[#allocation8 + $0x44] sm:$0xf] %v1426
      %1491 = vst [vmem:[#allocation8 + $0x48] sm:$0xf] %v1427
      %1492 = vst [vmem:[#allocation8 + $0x4c] sm:$0xf] %v1428
      %1493 = vst [vmem:[#allocation8 + $0x50] sm:$0xf] %v1429
      %1494 = vst [vmem:[#allocation8 + $0x54] sm:$0xf] %v1430
      %1495 = vst [vmem:[#allocation8 + $0x58] sm:$0xf] %v1431
      %1496 = vst [vmem:[#allocation8 + $0x5c] sm:$0xf] %v1432
      %1497 = vst [vmem:[#allocation8 + $0x60] sm:$0xf] %v1433
      %1498 = vst [vmem:[#allocation8 + $0x64] sm:$0xf] %v1434
      %1499 = vst [vmem:[#allocation8 + $0x68] sm:$0xf] %v1435
      %1500 = vst [vmem:[#allocation8 + $0x6c] sm:$0xf] %v1436
      %1501 = vst [vmem:[#allocation8 + $0x70] sm:$0xf] %v1437
      %1502 = vst [vmem:[#allocation8 + $0x74] sm:$0xf] %v1438
      %1503 = vst [vmem:[#allocation8 + $0x78] sm:$0xf] %v1439
      %1504 = vst [vmem:[#allocation8 + $0x7c] sm:$0xf] %v1440
      %1505 = vst [vmem:[#allocation8 + $0x80] sm:$0xf] %v1441
      %1506 = vst [vmem:[#allocation8 + $0x84] sm:$0xf] %v1442
      %1507 = vst [vmem:[#allocation8 + $0x88] sm:$0xf] %v1443
      %1508 = vst [vmem:[#allocation8 + $0x8c] sm:$0xf] %v1444
      %1509 = vst [vmem:[#allocation8 + $0x90] sm:$0xf] %v1445
      %1510 = vst [vmem:[#allocation8 + $0x94] sm:$0xf] %v1446
      %1511 = vst [vmem:[#allocation8 + $0x98] sm:$0xf] %v1447
      %1512 = vst [vmem:[#allocation8 + $0x9c] sm:$0xf] %v1448
      %1513 = vst [vmem:[#allocation8 + $0xa0] sm:$0xf] %v1449
      %1514 = vst [vmem:[#allocation8 + $0xa4] sm:$0xf] %v1450
      %1515 = vst [vmem:[#allocation8 + $0xa8] sm:$0xf] %v1451
      %1516 = vst [vmem:[#allocation8 + $0xac] sm:$0xf] %v1452
      %1517 = vst [vmem:[#allocation8 + $0xb0] sm:$0xf] %v1453
      %1518 = vst [vmem:[#allocation8 + $0xb4] sm:$0xf] %v1454
      %1519 = vst [vmem:[#allocation8 + $0xb8] sm:$0xf] %v1455
      %1520 = vst [vmem:[#allocation8 + $0xbc] sm:$0xf] %v1456
      %1521 = vst [vmem:[#allocation8 + $0xc0] sm:$0xf] %v1457
      %1522 = vst [vmem:[#allocation8 + $0xc4] sm:$0xf] %v1458
      %1523 = vst [vmem:[#allocation8 + $0xc8] sm:$0xf] %v1459
      %1524 = vst [vmem:[#allocation8 + $0xcc] sm:$0xf] %v1460
      %1525 = vst [vmem:[#allocation8 + $0xd0] sm:$0xf] %v1461
      %1526 = vst [vmem:[#allocation8 + $0xd4] sm:$0xf] %v1462
      %1527 = vst [vmem:[#allocation8 + $0xd8] sm:$0xf] %v1463
      %1528 = vst [vmem:[#allocation8 + $0xdc] sm:$0xf] %v1464
      %1529 = vst [vmem:[#allocation8 + $0xe0] sm:$0xf] %v1465
      %1530 = vst [vmem:[#allocation8 + $0xe4] sm:$0xf] %v1466
      %1531 = vst [vmem:[#allocation8 + $0xe8] sm:$0xf] %v1467
      %1532 = vst [vmem:[#allocation8 + $0xec] sm:$0xf] %v1468
      %1533 = vst [vmem:[#allocation8 + $0xf0] sm:$0xf] %v1469
      %1534 = vst [vmem:[#allocation8 + $0xf4] sm:$0xf] %v1470
      %1535 = vst [vmem:[#allocation8 + $0xf8] sm:$0xf] %v1471
      %1536 = vst [vmem:[#allocation8 + $0xfc] sm:$0xf] %v1472
    $region33: #{tpu_custom_call.1} parent=1 // pred_fallthru
      _
    // Predicated region
    $region34: #{tpu_custom_call.1} parent=1 // pred_check
      _
    $region35: #{tpu_custom_call.1} parent=1 // pred_check_branch
      %1538 = sbr.rel (0) target = $region37
    $region36: #{tpu_custom_call.1} parent=1 // pred_region
      %1540 = vsyncadd [#allocation5], 0
      %s1541 = sshll.u32 [#allocation8], 4
      %s1542 = int_to_ptr.vmem [resolvable:$true] %s1541
      %s1543 = sshll.u32 %s4, 4
      %s1544 = int_to_ptr.hbm [resolvable:$true] %s1543
      %1549 = dma.vmem_to_hbm [thread:$0]  %s1542, 4096, %s1544, [#allocation5], 64, 64, 4
    $region37: #{tpu_custom_call.1} parent=1 // pred_fallthru
      _
    // Predicated region
    $region38: #{tpu_custom_call.1} parent=1 // pred_check
      _
    $region39: #{tpu_custom_call.1} parent=1 // pred_check_branch
      %1551 = sbr.rel (0) target = $region41
    $region40: #{tpu_custom_call.1} parent=1 // pred_region
      %1553 = dma.done [#allocation5], 4096
    $region41: #{tpu_custom_call.1} parent=1 // pred_fallthru
      _
    %1554 = vsyncpa [#allocation4], 1
    %1555 = vsyncpa [#allocation7], 1
    %1556 = vsyncpa [#allocation5], 1

</llo_original>
